<compile_context>
chip_gen: v7x
topology: tpu7x:2x2x1
jax: 0.10.0
libtpu: 0.0.40
codegen_flags: <defaults>
</compile_context>

<pallas_src>
import functools

import jax
import jax.numpy as jnp
from jax import lax
from jax.experimental import pallas as pl
from jax.experimental.pallas import tpu as pltpu

_EPS = 1e-5
# f32 matmuls at HIGHEST precision to match the f32 PyTorch module numerics.
# For production throughput: cast activations/weights to bf16 with f32
# accumulation (preferred_element_type), keeping BN statistics in f32.
_PREC = lax.Precision.HIGHEST


def _mm(a, b):
    return lax.dot(a, b, precision=_PREC, preferred_element_type=jnp.float32)


def _scale_bias(s_sum, s_sq, gamma, beta, inv_count):
    """Fold training-mode batch statistics into a per-channel scale/bias."""
    mean = s_sum * inv_count                                   # (1, C)
    # one-pass variance (E[x^2] - E[x]^2), f32, clamped against cancellation.
    var = jnp.maximum(s_sq * inv_count - mean * mean, 0.0)     # (1, C)
    scale = gamma * lax.rsqrt(var + _EPS)
    bias = beta - mean * scale
    return scale, bias


def _accum_stats(sum_ref, sq_ref, y2d):
    """Accumulate per-channel sum / sum-of-squares across grid steps."""
    ps = jnp.sum(y2d, axis=0, keepdims=True)          # (1, C) -- VPU/XLU, not MXU
    pq = jnp.sum(y2d * y2d, axis=0, keepdims=True)    # (1, C)
    first = pl.program_id(0) == 0

    @pl.when(first)
    def _():
        sum_ref[...] = ps
        sq_ref[...] = pq

    @pl.when(jnp.logical_not(first))
    def _():
        sum_ref[...] = sum_ref[...] + ps
        sq_ref[...] = sq_ref[...] + pq


def _shift_hw(a, dy, dx):
    """a[n, h, w, c] -> a[n, h+dy, w+dx, c], zero-padded outside the image."""
    B, H, W, C = a.shape
    # H shift: static slice + zero concat along an untiled (major) axis.
    if dy == 1:
        a = jnp.concatenate(
            [a[:, 1:, :, :], jnp.zeros((B, 1, W, C), a.dtype)], axis=1)
    elif dy == -1:
        a = jnp.concatenate(
            [jnp.zeros((B, 1, W, C), a.dtype), a[:, :H - 1, :, :]], axis=1)
    # W shift: sublane roll (XLU slot) + edge mask -- no shift-matrix matmul.
    if dx != 0:
        a = pltpu.roll(a, (-dx) % W, axis=2)
        w_idx = lax.broadcasted_iota(jnp.int32, a.shape, 2)
        valid = jnp.logical_and(w_idx + dx >= 0, w_idx + dx < W)
        a = jnp.where(valid, a, 0.0)
    return a


# ------------------------------ pass 1: conv1 ------------------------------
def _k1_conv1(x_ref, w1_ref, y1_ref, s1_sum_ref, s1_sq_ref):
    y = _mm(x_ref[...], w1_ref[...])              # (rows_blk, Cmid)
    y1_ref[...] = y
    _accum_stats(s1_sum_ref, s1_sq_ref, y)


# ------------------ pass 2: bn1 + relu + conv2 (3x3, pad 1) -----------------
def _k2_bn1_conv2(y1_ref, s1_sum_ref, s1_sq_ref, g1_ref, b1_ref, w2_ref,
                  y2_ref, s2_sum_ref, s2_sq_ref, *, bhw, inv_count):
    B, H, W = bhw
    C = y1_ref.shape[-1]
    scale, bias = _scale_bias(s1_sum_ref[...], s1_sq_ref[...],
                              g1_ref[...], b1_ref[...], inv_count)
    y1 = jnp.maximum(y1_ref[...] * scale + bias, 0.0)        # (rows_blk, C)
    y1_4d = y1.reshape(B, H, W, C)

    acc = jnp.zeros((B * H * W, C), jnp.float32)
    for dy in (-1, 0, 1):
        for dx in (-1, 0, 1):
            tap = _shift_hw(y1_4d, dy, dx).reshape(B * H * W, C)
            acc = acc + _mm(tap, w2_ref[(dy + 1) * 3 + (dx + 1)])
    y2_ref[...] = acc
    _accum_stats(s2_sum_ref, s2_sq_ref, acc)


# ------------------------ pass 3: bn2 + relu + conv3 ------------------------
def _k3_bn2_conv3(y2_ref, s2_sum_ref, s2_sq_ref, g2_ref, b2_ref, w3_ref,
                  y3_ref, s3_sum_ref, s3_sq_ref, *, inv_count):
    scale, bias = _scale_bias(s2_sum_ref[...], s2_sq_ref[...],
                              g2_ref[...], b2_ref[...], inv_count)
    y2 = jnp.maximum(y2_ref[...] * scale + bias, 0.0)
    y = _mm(y2, w3_ref[...])                                  # (rows_blk, Cout)
    y3_ref[...] = y
    _accum_stats(s3_sum_ref, s3_sq_ref, y)


# ------------------ pass 4: bn3 + relu + residual add + relu ----------------
def _k4_bn3_residual(y3_ref, s3_sum_ref, s3_sq_ref, g3_ref, b3_ref, x_ref,
                     o_ref, *, inv_count):
    scale, bias = _scale_bias(s3_sum_ref[...], s3_sq_ref[...],
                              g3_ref[...], b3_ref[...], inv_count)
    y3 = jnp.maximum(y3_ref[...] * scale + bias, 0.0)
    o_ref[...] = jnp.maximum(y3 + x_ref[...], 0.0)


# --------------------------------- wrapper ----------------------------------
def bottleneck_pallas(x_nchw, p, *, batch_block=1):
    """x_nchw: (N, Cin, H, W) float32 (PyTorch NCHW). Returns NCHW output."""
    f32 = jnp.float32
    N, Cin, H, W = x_nchw.shape
    Cmid = p["w1"].shape[0]
    Cout = p["w3"].shape[0]
    assert Cout == Cin, "identity shortcut requires in_channels == 4*out_channels"
    assert N % batch_block == 0
    n_blk = N // batch_block
    rows_blk = batch_block * H * W
    inv_count = 1.0 / float(N * H * W)

    # activations: channels on lanes, flattened (n, h, w) rows on sublanes
    x2d = jnp.transpose(x_nchw, (0, 2, 3, 1)).reshape(N * H * W, Cin).astype(f32)

    # conv weights as plain channel-mixing matrices (no Kronecker expansion)
    w1 = p["w1"][:, :, 0, 0].T.astype(f32)                                  # (Cin, Cmid)
    w2 = jnp.transpose(p["w2"], (2, 3, 1, 0)).reshape(9, Cmid, Cmid).astype(f32)
    w3 = p["w3"][:, :, 0, 0].T.astype(f32)                                  # (Cmid, Cout)
    g1 = p["g1"].reshape(1, -1).astype(f32); b1 = p["b1"].reshape(1, -1).astype(f32)
    g2 = p["g2"].reshape(1, -1).astype(f32); b2 = p["b2"].reshape(1, -1).astype(f32)
    g3 = p["g3"].reshape(1, -1).astype(f32); b3 = p["b3"].reshape(1, -1).astype(f32)

    def act_spec(c):
        return pl.BlockSpec((rows_blk, c), lambda b: (b, 0))

    def full_spec(shape):
        zeros = (0,) * len(shape)
        return pl.BlockSpec(shape, lambda b: zeros)     # resident across grid

    def stats_shape(c):
        return jax.ShapeDtypeStruct((1, c), f32)

    arb = pltpu.CompilerParams(dimension_semantics=("arbitrary",))
    par = pltpu.CompilerParams(dimension_semantics=("parallel",))

    # pass 1: conv1 -> y1_raw + per-channel sum / sumsq
    y1_raw, s1_sum, s1_sq = pl.pallas_call(
        _k1_conv1,
        grid=(n_blk,),
        in_specs=[act_spec(Cin), full_spec((Cin, Cmid))],
        out_specs=(act_spec(Cmid), full_spec((1, Cmid)), full_spec((1, Cmid))),
        out_shape=(jax.ShapeDtypeStruct((N * H * W, Cmid), f32),
                   stats_shape(Cmid), stats_shape(Cmid)),
        compiler_params=arb,
    )(x2d, w1)

    # pass 2: bn1 + relu + conv2(3x3, pad 1) -> y2_raw + stats
    y2_raw, s2_sum, s2_sq = pl.pallas_call(
        functools.partial(_k2_bn1_conv2, bhw=(batch_block, H, W),
                          inv_count=inv_count),
        grid=(n_blk,),
        in_specs=[act_spec(Cmid), full_spec((1, Cmid)), full_spec((1, Cmid)),
                  full_spec((1, Cmid)), full_spec((1, Cmid)),
                  full_spec((9, Cmid, Cmid))],
        out_specs=(act_spec(Cmid), full_spec((1, Cmid)), full_spec((1, Cmid))),
        out_shape=(jax.ShapeDtypeStruct((N * H * W, Cmid), f32),
                   stats_shape(Cmid), stats_shape(Cmid)),
        compiler_params=arb,
    )(y1_raw, s1_sum, s1_sq, g1, b1, w2)

    # pass 3: bn2 + relu + conv3 -> y3_raw + stats
    y3_raw, s3_sum, s3_sq = pl.pallas_call(
        functools.partial(_k3_bn2_conv3, inv_count=inv_count),
        grid=(n_blk,),
        in_specs=[act_spec(Cmid), full_spec((1, Cmid)), full_spec((1, Cmid)),
                  full_spec((1, Cmid)), full_spec((1, Cmid)),
                  full_spec((Cmid, Cout))],
        out_specs=(act_spec(Cout), full_spec((1, Cout)), full_spec((1, Cout))),
        out_shape=(jax.ShapeDtypeStruct((N * H * W, Cout), f32),
                   stats_shape(Cout), stats_shape(Cout)),
        compiler_params=arb,
    )(y2_raw, s2_sum, s2_sq, g2, b2, w3)

    # pass 4: bn3 + relu + residual add + relu
    out2d = pl.pallas_call(
        functools.partial(_k4_bn3_residual, inv_count=inv_count),
        grid=(n_blk,),
        in_specs=[act_spec(Cout), full_spec((1, Cout)), full_spec((1, Cout)),
                  full_spec((1, Cout)), full_spec((1, Cout)), act_spec(Cin)],
        out_specs=act_spec(Cout),
        out_shape=jax.ShapeDtypeStruct((N * H * W, Cout), f32),
        compiler_params=par,
    )(y3_raw, s3_sum, s3_sq, g3, b3, x2d)

    return jnp.transpose(out2d.reshape(N, H, W, Cout), (0, 3, 1, 2))


# ---------------------------- pure-JAX reference ----------------------------
def bottleneck_ref(x, p):
    def conv(y, w, pad):
        return lax.conv_general_dilated(
            y, w, (1, 1), pad,
            dimension_numbers=("NCHW", "OIHW", "NCHW"),
            precision=lax.Precision.HIGHEST)

    def bn(y, g, b):
        m = jnp.mean(y, axis=(0, 2, 3), keepdims=True)
        v = jnp.var(y, axis=(0, 2, 3), keepdims=True)
        return ((y - m) * lax.rsqrt(v + _EPS) * g.reshape(1, -1, 1, 1)
                + b.reshape(1, -1, 1, 1))

    out = jax.nn.relu(bn(conv(x, p["w1"], "VALID"), p["g1"], p["b1"]))
    out = jax.nn.relu(bn(conv(out, p["w2"], ((1, 1), (1, 1))), p["g2"], p["b2"]))
    out = jax.nn.relu(bn(conv(out, p["w3"], "VALID"), p["g3"], p["b3"]))
    return jax.nn.relu(out + x)


def init_params(key, in_channels, out_channels):
    expansion = 4
    ks = jax.random.split(key, 9)
    cexp = out_channels * expansion
    f32 = jnp.float32
    return {
        "w1": 0.1 * jax.random.normal(ks[0], (out_channels, in_channels, 1, 1), f32),
        "w2": 0.1 * jax.random.normal(ks[1], (out_channels, out_channels, 3, 3), f32),
        "w3": 0.1 * jax.random.normal(ks[2], (cexp, out_channels, 1, 1), f32),
        "g1": 1.0 + 0.1 * jax.random.normal(ks[3], (out_channels,), f32),
        "b1": 0.1 * jax.random.normal(ks[4], (out_channels,), f32),
        "g2": 1.0 + 0.1 * jax.random.normal(ks[5], (out_channels,), f32),
        "b2": 0.1 * jax.random.normal(ks[6], (out_channels,), f32),
        "g3": 1.0 + 0.1 * jax.random.normal(ks[7], (cexp,), f32),
        "b3": 0.1 * jax.random.normal(ks[8], (cexp,), f32),
    }


if __name__ == "__main__":
    key = jax.random.PRNGKey(0)
    k_x, k_p = jax.random.split(key)

    N, H, W = 2, 16, 16
    out_channels = 4
    in_channels = out_channels * 4          # 16, so the identity shortcut is valid

    x = jax.random.normal(k_x, (N, in_channels, H, W), jnp.float32)
    params = init_params(k_p, in_channels, out_channels)

    y = bottleneck_pallas(x, params, batch_block=1)
    y = jax.block_until_ready(y)

    y_ref = bottleneck_ref(x, params)
    err = float(jnp.max(jnp.abs(y - y_ref)))
    if not bool(jnp.allclose(y, y_ref, atol=2e-3, rtol=2e-3)):
        raise AssertionError(f"Pallas kernel mismatch vs reference, max abs err = {err}")
    print("KERNEL_OK")
</pallas_src>

<mosaic_0001>
module attributes {stable_mosaic.version = 11 : i64} {
  func.func @_k1_conv1(%arg0: i32, %arg1: memref<256x16xf32, #tpu.memory_space<vmem>>, %arg2: memref<16x4xf32, #tpu.memory_space<vmem>>, %arg3: memref<256x4xf32, #tpu.memory_space<vmem>>, %arg4: memref<1x4xf32, #tpu.memory_space<vmem>>, %arg5: memref<1x4xf32, #tpu.memory_space<vmem>>) attributes {dimension_semantics = [#tpu.dimension_semantics<arbitrary>], iteration_bounds = array<i64: 2>, scalar_prefetch = 0 : i64, scratch_operands = 0 : i64, tpu.core_type = #tpu.core_type<tc>, window_params = [{transform_indices = @transform_0, window_bounds = array<i64: 256, 16>}, {pipeline_mode = #tpu.pipeline_mode<synchronous>, transform_indices = @transform_1, window_bounds = array<i64: 16, 4>}, {transform_indices = @transform_2, window_bounds = array<i64: 256, 4>}, {pipeline_mode = #tpu.pipeline_mode<synchronous>, transform_indices = @transform_3, window_bounds = array<i64: 1, 4>}, {pipeline_mode = #tpu.pipeline_mode<synchronous>, transform_indices = @transform_4, window_bounds = array<i64: 1, 4>}]} {
    %c0 = arith.constant 0 : index
    %c0_0 = arith.constant 0 : index
    %0 = vector.load %arg1[%c0, %c0_0] : memref<256x16xf32, #tpu.memory_space<vmem>>, vector<256x16xf32>
    %c0_1 = arith.constant 0 : index
    %c0_2 = arith.constant 0 : index
    %1 = vector.load %arg2[%c0_1, %c0_2] : memref<16x4xf32, #tpu.memory_space<vmem>>, vector<16x4xf32>
    %cst = arith.constant dense<0.000000e+00> : vector<256x4xf32>
    %2 = tpu.matmul %0, %1, %cst {dimension_numbers = #tpu.dot_dimension_numbers<[1], [0], [0], [1], [0, 0, 1, 1], [], []>, precision = #tpu.contract_precision<fp32>} : vector<256x16xf32>, vector<16x4xf32>, vector<256x4xf32> -> vector<256x4xf32>
    %c0_3 = arith.constant 0 : index
    %c0_4 = arith.constant 0 : index
    %3 = vector.load %arg3[%c0_3, %c0_4] : memref<256x4xf32, #tpu.memory_space<vmem>>, vector<256x4xf32>
    tpu.vector_store %arg3[%c0_3, %c0_4], %2 {strides = array<i32>} : memref<256x4xf32, #tpu.memory_space<vmem>>, vector<256x4xf32>,
    %cst_5 = arith.constant dense<0.000000e+00> : vector<4xf32>
    %4 = vector.multi_reduction <add>, %2, %cst_5 [0] : vector<256x4xf32> to vector<4xf32>
    %5 = vector.shape_cast %4 : vector<4xf32> to vector<1x4xf32>
    %6 = arith.mulf %2, %2 : vector<256x4xf32>
    %cst_6 = arith.constant dense<0.000000e+00> : vector<4xf32>
    %7 = vector.multi_reduction <add>, %6, %cst_6 [0] : vector<256x4xf32> to vector<4xf32>
    %8 = vector.shape_cast %7 : vector<4xf32> to vector<1x4xf32>
    %c0_i32 = arith.constant 0 : i32
    %9 = arith.cmpi eq, %arg0, %c0_i32 : i32
    %10 = arith.extui %9 : i1 to i32
    %c0_i32_7 = arith.constant 0 : i32
    %11 = arith.cmpi ne, %10, %c0_i32_7 : i32
    scf.if %11 {
      %c0_9 = arith.constant 0 : index
      %c0_10 = arith.constant 0 : index
      %15 = vector.load %arg4[%c0_9, %c0_10] : memref<1x4xf32, #tpu.memory_space<vmem>>, vector<1x4xf32>
      tpu.vector_store %arg4[%c0_9, %c0_10], %5 {strides = array<i32>} : memref<1x4xf32, #tpu.memory_space<vmem>>, vector<1x4xf32>,
      %c0_11 = arith.constant 0 : index
      %c0_12 = arith.constant 0 : index
      %16 = vector.load %arg5[%c0_11, %c0_12] : memref<1x4xf32, #tpu.memory_space<vmem>>, vector<1x4xf32>
      tpu.vector_store %arg5[%c0_11, %c0_12], %8 {strides = array<i32>} : memref<1x4xf32, #tpu.memory_space<vmem>>, vector<1x4xf32>,
    } else {
    }
    %true = arith.constant true
    %12 = arith.xori %9, %true : i1
    %13 = arith.extui %12 : i1 to i32
    %c0_i32_8 = arith.constant 0 : i32
    %14 = arith.cmpi ne, %13, %c0_i32_8 : i32
    scf.if %14 {
      %c0_9 = arith.constant 0 : index
      %c0_10 = arith.constant 0 : index
      %15 = vector.load %arg4[%c0_9, %c0_10] : memref<1x4xf32, #tpu.memory_space<vmem>>, vector<1x4xf32>
      %16 = arith.addf %15, %5 : vector<1x4xf32>
      %c0_11 = arith.constant 0 : index
      %c0_12 = arith.constant 0 : index
      %17 = vector.load %arg4[%c0_11, %c0_12] : memref<1x4xf32, #tpu.memory_space<vmem>>, vector<1x4xf32>
      tpu.vector_store %arg4[%c0_11, %c0_12], %16 {strides = array<i32>} : memref<1x4xf32, #tpu.memory_space<vmem>>, vector<1x4xf32>,
      %c0_13 = arith.constant 0 : index
      %c0_14 = arith.constant 0 : index
      %18 = vector.load %arg5[%c0_13, %c0_14] : memref<1x4xf32, #tpu.memory_space<vmem>>, vector<1x4xf32>
      %19 = arith.addf %18, %8 : vector<1x4xf32>
      %c0_15 = arith.constant 0 : index
      %c0_16 = arith.constant 0 : index
      %20 = vector.load %arg5[%c0_15, %c0_16] : memref<1x4xf32, #tpu.memory_space<vmem>>, vector<1x4xf32>
      tpu.vector_store %arg5[%c0_15, %c0_16], %19 {strides = array<i32>} : memref<1x4xf32, #tpu.memory_space<vmem>>, vector<1x4xf32>,
    } else {
    }
    return
  }
  func.func @transform_0(%arg0: i32) -> (i32, i32) {
    %c0_i32 = arith.constant 0 : i32
    %c0_i32_0 = arith.constant 0 : i32
    return %arg0, %c0_i32 : i32, i32
  }
  func.func @transform_1(%arg0: i32) -> (i32, i32) {
    %c0_i32 = arith.constant 0 : i32
    %c0_i32_0 = arith.constant 0 : i32
    %c0_i32_1 = arith.constant 0 : i32
    return %c0_i32, %c0_i32_0 : i32, i32
  }
  func.func @transform_2(%arg0: i32) -> (i32, i32) {
    %c0_i32 = arith.constant 0 : i32
    %c0_i32_0 = arith.constant 0 : i32
    return %arg0, %c0_i32 : i32, i32
  }
  func.func @transform_3(%arg0: i32) -> (i32, i32) {
    %c0_i32 = arith.constant 0 : i32
    %c0_i32_0 = arith.constant 0 : i32
    %c0_i32_1 = arith.constant 0 : i32
    return %c0_i32, %c0_i32_0 : i32, i32
  }
  func.func @transform_4(%arg0: i32) -> (i32, i32) {
    %c0_i32 = arith.constant 0 : i32
    %c0_i32_0 = arith.constant 0 : i32
    %c0_i32_1 = arith.constant 0 : i32
    return %c0_i32, %c0_i32_0 : i32, i32
  }
}

</mosaic_0001>

<llo_original>
// kernel: tpu_custom_call.1
$region0: #{tpu_custom_call.1}
  #allocation0 [shape = 'u32[]', space=smem, size = 0x4, offset = 0x4, fixed_abs, tag = 'smem constant byte address 0x4 - core index']
  #allocation1 [shape = 'u32[144,128]{1,0:T(1,128)}', space=vmem, size = 0x12000, scoped, tag = 'internal scratch']
  %s0 = inlined_call_operand.vmem [shape: f32[512,16], index: 0, kind: input, shape index: {}]
  %s1 = inlined_call_operand.vmem [shape: f32[16,4], index: 1, kind: input, shape index: {}]
  %s2 = inlined_call_operand.vmem [shape: f32[512,4], index: 2, kind: output, shape index: {0}]
  %s3 = inlined_call_operand.hbm [shape: f32[1,4], index: 3, kind: output, shape index: {1}]
  %s4 = inlined_call_operand.hbm [shape: f32[1,4], index: 4, kind: output, shape index: {2}]
  %5 = xla_tuple %s2, %s3, %s4
  %s6 = sld [smem:[#allocation0]]
  $region65: #{tpu_custom_call.1} parent=0
    _
  %s8 = ssub.s32 1, %s6
  %s9 = scalar_select 0, %s8, %s6
  $region1: #{tpu_custom_call.1} parent=0
    #allocation2 [shape = 'u8[512]{0}', space=vmem, size = 0x400, scoped, tag = 'output window, operand 1, single buffered']
    #allocation3 [shape = 's32[2]{0}', space=sflag, size = 0x8, scoped, tag = 'scoped memory for tpu_custom_call.1']
    #allocation4 [shape = 'u8[512]{0}', space=vmem, size = 0x400, scoped, tag = 'output window, operand 2, single buffered']
    #allocation5 [shape = 's32[1]{0}', space=sflag, size = 0x4, scoped, tag = 'scoped memory for tpu_custom_call.1']
    %10 = vsyncpa [#allocation3], 0
    %11 = vsyncpa [#allocation5], 0
    loop: start=0, step=1, limit=4
    $region2: #{tpu_custom_call.1} parent=1 // loop_pre_header
      _
    $region3: #{tpu_custom_call.1} parent=1 // loop_header
      %s13 = sphi 0, %s17
      %p14 = scmp.ge.s32.totalorder %s13, 4
      %s23 = sphi 0, %s25
      %s26 = sphi 0, %s23
      %s27 = sphi 0, %s26
      %s43 = sphi 0, %s27
      %s47 = sphi 0, %s47
      %s49 = sphi 0, %s47
      %s50 = sphi 0, %s49
      %s64 = sphi 0, %s50
      %s70 = sphi 0, %s72
      %s73 = sphi 0, %s70
      %s74 = sphi 0, %s73
      %s90 = sphi 0, %s74
      %s94 = sphi 0, %s94
      %s96 = sphi 0, %s94
      %s97 = sphi 0, %s96
      %s111 = sphi 0, %s97
      %s115 = sphi 0, %s115
      %s117 = sphi 0, %s115
      %s118 = sphi 0, %s117
      %s132 = sphi 0, %s118
    $region4: #{tpu_custom_call.1} parent=1 // loop_header_branch
      %16 = sbr.rel (%p14) target = $region8
    $region5: #{tpu_custom_call.1} parent=1 // loop_body
      %s18 = ssub.s32 %s13, 1
      %s19 = ssub.s32 %s13, 2
      %s20 = sadd.s32 %s13, 1
      %s21 = ssub.s32 %s13, %s20
      %p22 = scmp.eq.s32.totalorder %s21, 0
      %s24 = sadd.s32 %s23, 1
      %s25 = scalar_select %p22, %s23, %s24
      %p28 = pneg %p22
      %p29 = scmp.eq.s32.totalorder %s13, 1
      %p30 = por %p28, %p29
      %p31 = scmp.ne.s32.totalorder %s23, %s26
      %p32 = scmp.eq.s32.totalorder %s13, 0
      %p33 = por %p31, %p32
      %p34 = scmp.ne.s32.totalorder %s23, %s26
      %p35 = scmp.eq.s32.totalorder %s18, 1
      %p36 = por %p34, %p35
      %p37 = scmp.ne.s32.totalorder %s26, %s27
      %p38 = scmp.eq.s32.totalorder %s18, 0
      %p39 = por %p37, %p38
      %p40 = scmp.ne.s32.totalorder %s26, %s27
      %p41 = scmp.eq.s32.totalorder %s19, 1
      %p42 = por %p40, %p41
      %p44 = scmp.ne.s32.totalorder %s27, %s43
      %p45 = scmp.eq.s32.totalorder %s19, 0
      %p46 = por %p44, %p45
      %s48 = sadd.s32 %s47, 1
      %p51 = scmp.eq.s32.totalorder %s13, 1
      %p52 = scmp.ne.s32.totalorder %s47, %s49
      %p53 = scmp.eq.s32.totalorder %s13, 0
      %p54 = por %p52, %p53
      %p55 = scmp.ne.s32.totalorder %s47, %s49
      %p56 = scmp.eq.s32.totalorder %s18, 1
      %p57 = por %p55, %p56
      %p58 = scmp.ne.s32.totalorder %s49, %s50
      %p59 = scmp.eq.s32.totalorder %s18, 0
      %p60 = por %p58, %p59
      %p61 = scmp.ne.s32.totalorder %s49, %s50
      %p62 = scmp.eq.s32.totalorder %s19, 1
      %p63 = por %p61, %p62
      %p65 = scmp.ne.s32.totalorder %s50, %s64
      %p66 = scmp.eq.s32.totalorder %s19, 0
      %p67 = por %p65, %p66
      %s68 = ssub.s32 %s13, %s20
      %p69 = scmp.eq.s32.totalorder %s68, 0
      %s71 = sadd.s32 %s70, 1
      %s72 = scalar_select %p69, %s70, %s71
      %p75 = pneg %p69
      %p76 = scmp.eq.s32.totalorder %s13, 1
      %p77 = por %p75, %p76
      %p78 = scmp.ne.s32.totalorder %s70, %s73
      %p79 = scmp.eq.s32.totalorder %s13, 0
      %p80 = por %p78, %p79
      %p81 = scmp.ne.s32.totalorder %s70, %s73
      %p82 = scmp.eq.s32.totalorder %s18, 1
      %p83 = por %p81, %p82
      %p84 = scmp.ne.s32.totalorder %s73, %s74
      %p85 = scmp.eq.s32.totalorder %s18, 0
      %p86 = por %p84, %p85
      %p87 = scmp.ne.s32.totalorder %s73, %s74
      %p88 = scmp.eq.s32.totalorder %s19, 1
      %p89 = por %p87, %p88
      %p91 = scmp.ne.s32.totalorder %s74, %s90
      %p92 = scmp.eq.s32.totalorder %s19, 0
      %p93 = por %p91, %p92
      %s95 = sadd.s32 %s94, 1
      %p98 = scmp.eq.s32.totalorder %s13, 1
      %p99 = scmp.ne.s32.totalorder %s94, %s96
      %p100 = scmp.eq.s32.totalorder %s13, 0
      %p101 = por %p99, %p100
      %p102 = scmp.ne.s32.totalorder %s94, %s96
      %p103 = scmp.eq.s32.totalorder %s18, 1
      %p104 = por %p102, %p103
      %p105 = scmp.ne.s32.totalorder %s96, %s97
      %p106 = scmp.eq.s32.totalorder %s18, 0
      %p107 = por %p105, %p106
      %p108 = scmp.ne.s32.totalorder %s96, %s97
      %p109 = scmp.eq.s32.totalorder %s19, 1
      %p110 = por %p108, %p109
      %p112 = scmp.ne.s32.totalorder %s97, %s111
      %p113 = scmp.eq.s32.totalorder %s19, 0
      %p114 = por %p112, %p113
      %s116 = sadd.s32 %s115, 1
      %p119 = scmp.eq.s32.totalorder %s13, 1
      %p120 = scmp.ne.s32.totalorder %s115, %s117
      %p121 = scmp.eq.s32.totalorder %s13, 0
      %p122 = por %p120, %p121
      %p123 = scmp.ne.s32.totalorder %s115, %s117
      %p124 = scmp.eq.s32.totalorder %s18, 1
      %p125 = por %p123, %p124
      %p126 = scmp.ne.s32.totalorder %s117, %s118
      %p127 = scmp.eq.s32.totalorder %s18, 0
      %p128 = por %p126, %p127
      %p129 = scmp.ne.s32.totalorder %s117, %s118
      %p130 = scmp.eq.s32.totalorder %s19, 1
      %p131 = por %p129, %p130
      %p133 = scmp.ne.s32.totalorder %s118, %s132
      %p134 = scmp.eq.s32.totalorder %s19, 0
      %p135 = por %p133, %p134
      %p136 = scmp.le.s32.totalorder 1, %s13
      %p137 = scmp.lt.s32.totalorder %s13, 3
      %p138 = pnand %p136, %p137
      %p139 = pneg %p138
      // Predicated region
      $region9: #{tpu_custom_call.1} parent=5 // pred_check
        _
      $region10: #{tpu_custom_call.1} parent=5 // pred_check_branch
        %141 = sbr.rel (%p138) target = $region12
      $region11: #{tpu_custom_call.1} parent=5 // pred_region
        %s142 = ssub.s32 %s13, 1
        // Predicated region
        $region13: #{tpu_custom_call.1} parent=11 // pred_check
          %p143 = pneg %p60
        $region14: #{tpu_custom_call.1} parent=11 // pred_check_branch
          %145 = sbr.rel (%p143) target = $region16
        $region15: #{tpu_custom_call.1} parent=11 // pred_region
          _
        $region16: #{tpu_custom_call.1} parent=11 // pred_fallthru
          _
      $region12: #{tpu_custom_call.1} parent=5 // pred_fallthru
        _
      %p146 = scmp.lt.s32.totalorder %s13, 2
      // Predicated region
      $region17: #{tpu_custom_call.1} parent=5 // pred_check
        %p147 = pneg %p146
      $region18: #{tpu_custom_call.1} parent=5 // pred_check_branch
        %149 = sbr.rel (%p147) target = $region20
      $region19: #{tpu_custom_call.1} parent=5 // pred_region
        // Predicated region
        $region21: #{tpu_custom_call.1} parent=19 // pred_check
          %p150 = pneg %p33
        $region22: #{tpu_custom_call.1} parent=19 // pred_check_branch
          %152 = sbr.rel (%p150) target = $region24
        $region23: #{tpu_custom_call.1} parent=19 // pred_region
          %s153 = smul.u32 32, %s13
          %p154 = scmp.lt.s32.totalorder %s153, 63
          %s155 = scalar_select %p154, %s153, 63
          %s156 = smul.addr %s155, 8
          %s157 = scalar_lea.vmem %s0, %s156
          %s158 = smul.u32 32, %s13
        $region24: #{tpu_custom_call.1} parent=19 // pred_fallthru
          _
      $region20: #{tpu_custom_call.1} parent=5 // pred_fallthru
        _
      %p159 = scmp.le.s32.totalorder 1, %s13
      %p160 = scmp.lt.s32.totalorder %s13, 3
      %p161 = pnand %p159, %p160
      %p162 = pneg %p161
      // Predicated region
      $region25: #{tpu_custom_call.1} parent=5 // pred_check
        _
      $region26: #{tpu_custom_call.1} parent=5 // pred_check_branch
        %164 = sbr.rel (%p161) target = $region28
      $region27: #{tpu_custom_call.1} parent=5 // pred_region
        %s165 = ssub.s32 %s13, 1
        %s166 = smul.u32 32, %s18
        %p167 = scmp.lt.s32.totalorder %s166, 63
        %s168 = scalar_select %p167, %s166, 63
        %s169 = smul.addr %s168, 8
        %s170 = scalar_lea.vmem %s0, %s169
        %p171 = pneg %p39
        %p172 = pneg %p36
        %p173 = pneg %p60
        %p174 = pneg %p57
        %p175 = pneg %p86
        %p176 = pneg %p83
        %s177 = smul.u32 32, %s18
        %p178 = scmp.lt.s32.totalorder %s177, 63
        %s179 = scalar_select %p178, %s177, 63
        %s180 = smul.addr %s179, 8
        %s181 = scalar_lea.vmem %s2, %s180
        %p182 = pneg %p107
        %p183 = pneg %p104
        %p184 = pneg %p128
        %p185 = pneg %p125
        %s186 = smul.u32 32, %s18
        %p187 = scmp.lt.s32.totalorder %s186, 63
        %s188 = scalar_select %p187, %s186, 63
        %s189 = smul.addr %s188, 8
        %s190 = scalar_lea.vmem %s0, %s189
        %s191 = smul.u32 32, %s18
        %s192 = smul.u32 32, %s18
        %p193 = scmp.lt.s32.totalorder %s192, 63
        %s194 = scalar_select %p193, %s192, 63
        %s195 = smul.addr %s194, 8
        %s196 = scalar_lea.vmem %s2, %s195
        %s197 = smul.u32 32, %s18
        %v198 = vld [vmem:[%s190] sm:$0xff]
        %v199 = vld [vmem:[%s190 + $0x8] sm:$0xff]
        %v200 = vld [vmem:[%s190 + $0x10] sm:$0xff]
        %v201 = vld [vmem:[%s190 + $0x18] sm:$0xff]
        %v202 = vld [vmem:[%s190 + $0x20] sm:$0xff]
        %v203 = vld [vmem:[%s190 + $0x28] sm:$0xff]
        %v204 = vld [vmem:[%s190 + $0x30] sm:$0xff]
        %v205 = vld [vmem:[%s190 + $0x38] sm:$0xff]
        %v206 = vld [vmem:[%s190 + $0x40] sm:$0xff]
        %v207 = vld [vmem:[%s190 + $0x48] sm:$0xff]
        %v208 = vld [vmem:[%s190 + $0x50] sm:$0xff]
        %v209 = vld [vmem:[%s190 + $0x58] sm:$0xff]
        %v210 = vld [vmem:[%s190 + $0x60] sm:$0xff]
        %v211 = vld [vmem:[%s190 + $0x68] sm:$0xff]
        %v212 = vld [vmem:[%s190 + $0x70] sm:$0xff]
        %v213 = vld [vmem:[%s190 + $0x78] sm:$0xff]
        %v214 = vld [vmem:[%s190 + $0x80] sm:$0xff]
        %v215 = vld [vmem:[%s190 + $0x88] sm:$0xff]
        %v216 = vld [vmem:[%s190 + $0x90] sm:$0xff]
        %v217 = vld [vmem:[%s190 + $0x98] sm:$0xff]
        %v218 = vld [vmem:[%s190 + $0xa0] sm:$0xff]
        %v219 = vld [vmem:[%s190 + $0xa8] sm:$0xff]
        %v220 = vld [vmem:[%s190 + $0xb0] sm:$0xff]
        %v221 = vld [vmem:[%s190 + $0xb8] sm:$0xff]
        %v222 = vld [vmem:[%s190 + $0xc0] sm:$0xff]
        %v223 = vld [vmem:[%s190 + $0xc8] sm:$0xff]
        %v224 = vld [vmem:[%s190 + $0xd0] sm:$0xff]
        %v225 = vld [vmem:[%s190 + $0xd8] sm:$0xff]
        %v226 = vld [vmem:[%s190 + $0xe0] sm:$0xff]
        %v227 = vld [vmem:[%s190 + $0xe8] sm:$0xff]
        %v228 = vld [vmem:[%s190 + $0xf0] sm:$0xff]
        %v229 = vld [vmem:[%s190 + $0xf8] sm:$0xff]
        %v230 = vld [vmem:[%s1] sm:$0xff]
        %v231 = vld [vmem:[%s1 + $0x8] sm:$0xff]
        %vm232 = vcmask 130048
        %v234 = vsel %vm232, %v198, 0
        %v237 = vsel %vm232, %v199, 0
        %v240 = vsel %vm232, %v200, 0
        %v243 = vsel %vm232, %v201, 0
        %v246 = vsel %vm232, %v202, 0
        %v249 = vsel %vm232, %v203, 0
        %v252 = vsel %vm232, %v204, 0
        %v255 = vsel %vm232, %v205, 0
        %v258 = vsel %vm232, %v206, 0
        %v261 = vsel %vm232, %v207, 0
        %v264 = vsel %vm232, %v208, 0
        %v267 = vsel %vm232, %v209, 0
        %v270 = vsel %vm232, %v210, 0
        %v273 = vsel %vm232, %v211, 0
        %v276 = vsel %vm232, %v212, 0
        %v279 = vsel %vm232, %v213, 0
        %v282 = vsel %vm232, %v214, 0
        %v285 = vsel %vm232, %v215, 0
        %v288 = vsel %vm232, %v216, 0
        %v291 = vsel %vm232, %v217, 0
        %v294 = vsel %vm232, %v218, 0
        %v297 = vsel %vm232, %v219, 0
        %v300 = vsel %vm232, %v220, 0
        %v303 = vsel %vm232, %v221, 0
        %v306 = vsel %vm232, %v222, 0
        %v309 = vsel %vm232, %v223, 0
        %v312 = vsel %vm232, %v224, 0
        %v315 = vsel %vm232, %v225, 0
        %v318 = vsel %vm232, %v226, 0
        %v321 = vsel %vm232, %v227, 0
        %v324 = vsel %vm232, %v228, 0
        %v327 = vsel %vm232, %v229, 0
        %329 = vmatprep.subr.mxu0 0.0
        %v330 = vand.u32 %v230, 4294901760
        %331 = vmatpush1.msra.mxu0 %v330
        %332 = vmatprep.subr.mxu0 0.0
        %v333 = vand.u32 %v231, 4294901760
        %334 = vmatpush1.msra.mxu0 %v333
        %335 = vmatprep.subr.mxu0 0.0
        %336 = vmatpush1.msra.mxu0 0.0
        %337 = vmatprep.subr.mxu0 0.0
        %338 = vmatpush1.msra.mxu0 0.0
        %339 = vmatprep.subr.mxu0 0.0
        %340 = vmatpush1.msra.mxu0 0.0
        %341 = vmatprep.subr.mxu0 0.0
        %342 = vmatpush1.msra.mxu0 0.0
        %343 = vmatprep.subr.mxu0 0.0
        %344 = vmatpush1.msra.mxu0 0.0
        %345 = vmatprep.subr.mxu0 0.0
        %346 = vmatpush1.msra.mxu0 0.0
        %347 = vmatprep.subr.mxu0 0.0
        %348 = vmatpush1.msra.mxu0 0.0
        %349 = vmatprep.subr.mxu0 0.0
        %350 = vmatpush1.msra.mxu0 0.0
        %351 = vmatprep.subr.mxu0 0.0
        %352 = vmatpush1.msra.mxu0 0.0
        %353 = vmatprep.subr.mxu0 0.0
        %354 = vmatpush1.msra.mxu0 0.0
        %355 = vmatprep.subr.mxu0 0.0
        %356 = vmatpush1.msra.mxu0 0.0
        %357 = vmatprep.subr.mxu0 0.0
        %358 = vmatpush1.msra.mxu0 0.0
        %359 = vmatprep.subr.mxu0 0.0
        %360 = vmatpush1.msra.mxu0 0.0
        %361 = vmatprep.subr.mxu0 0.0
        %362 = vmatpush1.msra.mxu0 0.0
        %363 = vmatprep.subr.mxu0 0.0
        %364 = vmatpush1.msra.mxu0 0.0
        %365 = vmatprep.subr.mxu0 0.0
        %366 = vmatpush1.msra.mxu0 0.0
        %367 = vmatprep.subr.mxu0 0.0
        %368 = vmatpush1.msra.mxu0 0.0
        %369 = vmatprep.subr.mxu0 0.0
        %370 = vmatpush1.msra.mxu0 0.0
        %371 = vmatprep.subr.mxu0 0.0
        %372 = vmatpush1.msra.mxu0 0.0
        %373 = vmatprep.subr.mxu0 0.0
        %374 = vmatpush1.msra.mxu0 0.0
        %375 = vmatprep.subr.mxu0 0.0
        %376 = vmatpush1.msra.mxu0 0.0
        %377 = vmatprep.subr.mxu0 0.0
        %378 = vmatpush1.msra.mxu0 0.0
        %379 = vmatprep.subr.mxu0 0.0
        %380 = vmatpush1.msra.mxu0 0.0
        %381 = vmatprep.subr.mxu0 0.0
        %382 = vmatpush1.msra.mxu0 0.0
        %383 = vmatprep.subr.mxu0 0.0
        %384 = vmatpush1.msra.mxu0 0.0
        %385 = vmatprep.subr.mxu0 0.0
        %386 = vmatpush1.msra.mxu0 0.0
        %387 = vmatprep.subr.mxu0 0.0
        %388 = vmatpush1.msra.mxu0 0.0
        %389 = vmatprep.subr.mxu0 0.0
        %390 = vmatpush1.msra.mxu0 0.0
        %391 = vmatprep.subr.mxu0 0.0
        %392 = vmatpush1.msra.mxu0 0.0
        %393 = vmatprep.subr.mxu0 0.0
        %394 = vmatpush1.msra.mxu0 0.0
        %395 = vmatprep.mubr.f32.mxu0 0.0
        %v396 = vand.u32 %v234, 4294901760
        %v397 = vsub.f32 %v234, %v396
        %v398 = vand.u32 %v397, 4294901760
        %v399 = vsub.f32 %v397, %v398
        %v400 = vand.u32 %v399, 4294901760
        %401 = vmatmul.mubr.f32.gmra.mrb[0].mxu0 %v400
        %v402 = vpop.f32.mrb[0].mxu0
        %v403 = vadd.f32 0.0, %v402
        %v404 = vpop.f32.mrb[0].mxu0
        %405 = vmatprep.mubr.f32.mxu0 0.0
        %v406 = vand.u32 %v237, 4294901760
        %v407 = vsub.f32 %v237, %v406
        %v408 = vand.u32 %v407, 4294901760
        %v409 = vsub.f32 %v407, %v408
        %v410 = vand.u32 %v409, 4294901760
        %411 = vmatmul.mubr.f32.gmra.mrb[0].mxu0 %v410
        %v412 = vpop.f32.mrb[0].mxu0
        %v413 = vadd.f32 0.0, %v412
        %v414 = vpop.f32.mrb[0].mxu0
        %415 = vmatprep.mubr.f32.mxu0 0.0
        %v416 = vand.u32 %v240, 4294901760
        %v417 = vsub.f32 %v240, %v416
        %v418 = vand.u32 %v417, 4294901760
        %v419 = vsub.f32 %v417, %v418
        %v420 = vand.u32 %v419, 4294901760
        %421 = vmatmul.mubr.f32.gmra.mrb[0].mxu0 %v420
        %v422 = vpop.f32.mrb[0].mxu0
        %v423 = vadd.f32 0.0, %v422
        %v424 = vpop.f32.mrb[0].mxu0
        %425 = vmatprep.mubr.f32.mxu0 0.0
        %v426 = vand.u32 %v243, 4294901760
        %v427 = vsub.f32 %v243, %v426
        %v428 = vand.u32 %v427, 4294901760
        %v429 = vsub.f32 %v427, %v428
        %v430 = vand.u32 %v429, 4294901760
        %431 = vmatmul.mubr.f32.gmra.mrb[0].mxu0 %v430
        %v432 = vpop.f32.mrb[0].mxu0
        %v433 = vadd.f32 0.0, %v432
        %v434 = vpop.f32.mrb[0].mxu0
        %435 = vmatprep.mubr.f32.mxu0 0.0
        %v436 = vand.u32 %v246, 4294901760
        %v437 = vsub.f32 %v246, %v436
        %v438 = vand.u32 %v437, 4294901760
        %v439 = vsub.f32 %v437, %v438
        %v440 = vand.u32 %v439, 4294901760
        %441 = vmatmul.mubr.f32.gmra.mrb[0].mxu0 %v440
        %v442 = vpop.f32.mrb[0].mxu0
        %v443 = vadd.f32 0.0, %v442
        %v444 = vpop.f32.mrb[0].mxu0
        %445 = vmatprep.mubr.f32.mxu0 0.0
        %v446 = vand.u32 %v249, 4294901760
        %v447 = vsub.f32 %v249, %v446
        %v448 = vand.u32 %v447, 4294901760
        %v449 = vsub.f32 %v447, %v448
        %v450 = vand.u32 %v449, 4294901760
        %451 = vmatmul.mubr.f32.gmra.mrb[0].mxu0 %v450
        %v452 = vpop.f32.mrb[0].mxu0
        %v453 = vadd.f32 0.0, %v452
        %v454 = vpop.f32.mrb[0].mxu0
        %455 = vmatprep.mubr.f32.mxu0 0.0
        %v456 = vand.u32 %v252, 4294901760
        %v457 = vsub.f32 %v252, %v456
        %v458 = vand.u32 %v457, 4294901760
        %v459 = vsub.f32 %v457, %v458
        %v460 = vand.u32 %v459, 4294901760
        %461 = vmatmul.mubr.f32.gmra.mrb[0].mxu0 %v460
        %v462 = vpop.f32.mrb[0].mxu0
        %v463 = vadd.f32 0.0, %v462
        %v464 = vpop.f32.mrb[0].mxu0
        %465 = vmatprep.mubr.f32.mxu0 0.0
        %v466 = vand.u32 %v255, 4294901760
        %v467 = vsub.f32 %v255, %v466
        %v468 = vand.u32 %v467, 4294901760
        %v469 = vsub.f32 %v467, %v468
        %v470 = vand.u32 %v469, 4294901760
        %471 = vmatmul.mubr.f32.gmra.mrb[0].mxu0 %v470
        %v472 = vpop.f32.mrb[0].mxu0
        %v473 = vadd.f32 0.0, %v472
        %v474 = vpop.f32.mrb[0].mxu0
        %475 = vmatprep.mubr.f32.mxu0 0.0
        %v476 = vand.u32 %v258, 4294901760
        %v477 = vsub.f32 %v258, %v476
        %v478 = vand.u32 %v477, 4294901760
        %v479 = vsub.f32 %v477, %v478
        %v480 = vand.u32 %v479, 4294901760
        %481 = vmatmul.mubr.f32.gmra.mrb[0].mxu0 %v480
        %v482 = vpop.f32.mrb[0].mxu0
        %v483 = vadd.f32 0.0, %v482
        %v484 = vpop.f32.mrb[0].mxu0
        %485 = vmatprep.mubr.f32.mxu0 0.0
        %v486 = vand.u32 %v261, 4294901760
        %v487 = vsub.f32 %v261, %v486
        %v488 = vand.u32 %v487, 4294901760
        %v489 = vsub.f32 %v487, %v488
        %v490 = vand.u32 %v489, 4294901760
        %491 = vmatmul.mubr.f32.gmra.mrb[0].mxu0 %v490
        %v492 = vpop.f32.mrb[0].mxu0
        %v493 = vadd.f32 0.0, %v492
        %v494 = vpop.f32.mrb[0].mxu0
        %495 = vmatprep.mubr.f32.mxu0 0.0
        %v496 = vand.u32 %v264, 4294901760
        %v497 = vsub.f32 %v264, %v496
        %v498 = vand.u32 %v497, 4294901760
        %v499 = vsub.f32 %v497, %v498
        %v500 = vand.u32 %v499, 4294901760
        %501 = vmatmul.mubr.f32.gmra.mrb[0].mxu0 %v500
        %v502 = vpop.f32.mrb[0].mxu0
        %v503 = vadd.f32 0.0, %v502
        %v504 = vpop.f32.mrb[0].mxu0
        %505 = vmatprep.mubr.f32.mxu0 0.0
        %v506 = vand.u32 %v267, 4294901760
        %v507 = vsub.f32 %v267, %v506
        %v508 = vand.u32 %v507, 4294901760
        %v509 = vsub.f32 %v507, %v508
        %v510 = vand.u32 %v509, 4294901760
        %511 = vmatmul.mubr.f32.gmra.mrb[0].mxu0 %v510
        %v512 = vpop.f32.mrb[0].mxu0
        %v513 = vadd.f32 0.0, %v512
        %v514 = vpop.f32.mrb[0].mxu0
        %515 = vmatprep.mubr.f32.mxu0 0.0
        %v516 = vand.u32 %v270, 4294901760
        %v517 = vsub.f32 %v270, %v516
        %v518 = vand.u32 %v517, 4294901760
        %v519 = vsub.f32 %v517, %v518
        %v520 = vand.u32 %v519, 4294901760
        %521 = vmatmul.mubr.f32.gmra.mrb[0].mxu0 %v520
        %v522 = vpop.f32.mrb[0].mxu0
        %v523 = vadd.f32 0.0, %v522
        %v524 = vpop.f32.mrb[0].mxu0
        %525 = vmatprep.mubr.f32.mxu0 0.0
        %v526 = vand.u32 %v273, 4294901760
        %v527 = vsub.f32 %v273, %v526
        %v528 = vand.u32 %v527, 4294901760
        %v529 = vsub.f32 %v527, %v528
        %v530 = vand.u32 %v529, 4294901760
        %531 = vmatmul.mubr.f32.gmra.mrb[0].mxu0 %v530
        %v532 = vpop.f32.mrb[0].mxu0
        %v533 = vadd.f32 0.0, %v532
        %v534 = vpop.f32.mrb[0].mxu0
        %535 = vmatprep.mubr.f32.mxu0 0.0
        %v536 = vand.u32 %v276, 4294901760
        %v537 = vsub.f32 %v276, %v536
        %v538 = vand.u32 %v537, 4294901760
        %v539 = vsub.f32 %v537, %v538
        %v540 = vand.u32 %v539, 4294901760
        %541 = vmatmul.mubr.f32.gmra.mrb[0].mxu0 %v540
        %v542 = vpop.f32.mrb[0].mxu0
        %v543 = vadd.f32 0.0, %v542
        %v544 = vpop.f32.mrb[0].mxu0
        %545 = vmatprep.mubr.f32.mxu0 0.0
        %v546 = vand.u32 %v279, 4294901760
        %v547 = vsub.f32 %v279, %v546
        %v548 = vand.u32 %v547, 4294901760
        %v549 = vsub.f32 %v547, %v548
        %v550 = vand.u32 %v549, 4294901760
        %551 = vmatmul.mubr.f32.gmra.mrb[0].mxu0 %v550
        %v552 = vpop.f32.mrb[0].mxu0
        %v553 = vadd.f32 0.0, %v552
        %v554 = vpop.f32.mrb[0].mxu0
        %555 = vmatprep.mubr.f32.mxu0 0.0
        %v556 = vand.u32 %v282, 4294901760
        %v557 = vsub.f32 %v282, %v556
        %v558 = vand.u32 %v557, 4294901760
        %v559 = vsub.f32 %v557, %v558
        %v560 = vand.u32 %v559, 4294901760
        %561 = vmatmul.mubr.f32.gmra.mrb[0].mxu0 %v560
        %v562 = vpop.f32.mrb[0].mxu0
        %v563 = vadd.f32 0.0, %v562
        %v564 = vpop.f32.mrb[0].mxu0
        %565 = vmatprep.mubr.f32.mxu0 0.0
        %v566 = vand.u32 %v285, 4294901760
        %v567 = vsub.f32 %v285, %v566
        %v568 = vand.u32 %v567, 4294901760
        %v569 = vsub.f32 %v567, %v568
        %v570 = vand.u32 %v569, 4294901760
        %571 = vmatmul.mubr.f32.gmra.mrb[0].mxu0 %v570
        %v572 = vpop.f32.mrb[0].mxu0
        %v573 = vadd.f32 0.0, %v572
        %v574 = vpop.f32.mrb[0].mxu0
        %575 = vmatprep.mubr.f32.mxu0 0.0
        %v576 = vand.u32 %v288, 4294901760
        %v577 = vsub.f32 %v288, %v576
        %v578 = vand.u32 %v577, 4294901760
        %v579 = vsub.f32 %v577, %v578
        %v580 = vand.u32 %v579, 4294901760
        %581 = vmatmul.mubr.f32.gmra.mrb[0].mxu0 %v580
        %v582 = vpop.f32.mrb[0].mxu0
        %v583 = vadd.f32 0.0, %v582
        %v584 = vpop.f32.mrb[0].mxu0
        %585 = vmatprep.mubr.f32.mxu0 0.0
        %v586 = vand.u32 %v291, 4294901760
        %v587 = vsub.f32 %v291, %v586
        %v588 = vand.u32 %v587, 4294901760
        %v589 = vsub.f32 %v587, %v588
        %v590 = vand.u32 %v589, 4294901760
        %591 = vmatmul.mubr.f32.gmra.mrb[0].mxu0 %v590
        %v592 = vpop.f32.mrb[0].mxu0
        %v593 = vadd.f32 0.0, %v592
        %v594 = vpop.f32.mrb[0].mxu0
        %595 = vmatprep.mubr.f32.mxu0 0.0
        %v596 = vand.u32 %v294, 4294901760
        %v597 = vsub.f32 %v294, %v596
        %v598 = vand.u32 %v597, 4294901760
        %v599 = vsub.f32 %v597, %v598
        %v600 = vand.u32 %v599, 4294901760
        %601 = vmatmul.mubr.f32.gmra.mrb[0].mxu0 %v600
        %v602 = vpop.f32.mrb[0].mxu0
        %v603 = vadd.f32 0.0, %v602
        %v604 = vpop.f32.mrb[0].mxu0
        %605 = vmatprep.mubr.f32.mxu0 0.0
        %v606 = vand.u32 %v297, 4294901760
        %v607 = vsub.f32 %v297, %v606
        %v608 = vand.u32 %v607, 4294901760
        %v609 = vsub.f32 %v607, %v608
        %v610 = vand.u32 %v609, 4294901760
        %611 = vmatmul.mubr.f32.gmra.mrb[0].mxu0 %v610
        %v612 = vpop.f32.mrb[0].mxu0
        %v613 = vadd.f32 0.0, %v612
        %v614 = vpop.f32.mrb[0].mxu0
        %615 = vmatprep.mubr.f32.mxu0 0.0
        %v616 = vand.u32 %v300, 4294901760
        %v617 = vsub.f32 %v300, %v616
        %v618 = vand.u32 %v617, 4294901760
        %v619 = vsub.f32 %v617, %v618
        %v620 = vand.u32 %v619, 4294901760
        %621 = vmatmul.mubr.f32.gmra.mrb[0].mxu0 %v620
        %v622 = vpop.f32.mrb[0].mxu0
        %v623 = vadd.f32 0.0, %v622
        %v624 = vpop.f32.mrb[0].mxu0
        %625 = vmatprep.mubr.f32.mxu0 0.0
        %v626 = vand.u32 %v303, 4294901760
        %v627 = vsub.f32 %v303, %v626
        %v628 = vand.u32 %v627, 4294901760
        %v629 = vsub.f32 %v627, %v628
        %v630 = vand.u32 %v629, 4294901760
        %631 = vmatmul.mubr.f32.gmra.mrb[0].mxu0 %v630
        %v632 = vpop.f32.mrb[0].mxu0
        %v633 = vadd.f32 0.0, %v632
        %v634 = vpop.f32.mrb[0].mxu0
        %635 = vmatprep.mubr.f32.mxu0 0.0
        %v636 = vand.u32 %v306, 4294901760
        %v637 = vsub.f32 %v306, %v636
        %v638 = vand.u32 %v637, 4294901760
        %v639 = vsub.f32 %v637, %v638
        %v640 = vand.u32 %v639, 4294901760
        %641 = vmatmul.mubr.f32.gmra.mrb[0].mxu0 %v640
        %v642 = vpop.f32.mrb[0].mxu0
        %v643 = vadd.f32 0.0, %v642
        %v644 = vpop.f32.mrb[0].mxu0
        %645 = vmatprep.mubr.f32.mxu0 0.0
        %v646 = vand.u32 %v309, 4294901760
        %v647 = vsub.f32 %v309, %v646
        %v648 = vand.u32 %v647, 4294901760
        %v649 = vsub.f32 %v647, %v648
        %v650 = vand.u32 %v649, 4294901760
        %651 = vmatmul.mubr.f32.gmra.mrb[0].mxu0 %v650
        %v652 = vpop.f32.mrb[0].mxu0
        %v653 = vadd.f32 0.0, %v652
        %v654 = vpop.f32.mrb[0].mxu0
        %655 = vmatprep.mubr.f32.mxu0 0.0
        %v656 = vand.u32 %v312, 4294901760
        %v657 = vsub.f32 %v312, %v656
        %v658 = vand.u32 %v657, 4294901760
        %v659 = vsub.f32 %v657, %v658
        %v660 = vand.u32 %v659, 4294901760
        %661 = vmatmul.mubr.f32.gmra.mrb[0].mxu0 %v660
        %v662 = vpop.f32.mrb[0].mxu0
        %v663 = vadd.f32 0.0, %v662
        %v664 = vpop.f32.mrb[0].mxu0
        %665 = vmatprep.mubr.f32.mxu0 0.0
        %v666 = vand.u32 %v315, 4294901760
        %v667 = vsub.f32 %v315, %v666
        %v668 = vand.u32 %v667, 4294901760
        %v669 = vsub.f32 %v667, %v668
        %v670 = vand.u32 %v669, 4294901760
        %671 = vmatmul.mubr.f32.gmra.mrb[0].mxu0 %v670
        %v672 = vpop.f32.mrb[0].mxu0
        %v673 = vadd.f32 0.0, %v672
        %v674 = vpop.f32.mrb[0].mxu0
        %675 = vmatprep.mubr.f32.mxu0 0.0
        %v676 = vand.u32 %v318, 4294901760
        %v677 = vsub.f32 %v318, %v676
        %v678 = vand.u32 %v677, 4294901760
        %v679 = vsub.f32 %v677, %v678
        %v680 = vand.u32 %v679, 4294901760
        %681 = vmatmul.mubr.f32.gmra.mrb[0].mxu0 %v680
        %v682 = vpop.f32.mrb[0].mxu0
        %v683 = vadd.f32 0.0, %v682
        %v684 = vpop.f32.mrb[0].mxu0
        %685 = vmatprep.mubr.f32.mxu0 0.0
        %v686 = vand.u32 %v321, 4294901760
        %v687 = vsub.f32 %v321, %v686
        %v688 = vand.u32 %v687, 4294901760
        %v689 = vsub.f32 %v687, %v688
        %v690 = vand.u32 %v689, 4294901760
        %691 = vmatmul.mubr.f32.gmra.mrb[0].mxu0 %v690
        %v692 = vpop.f32.mrb[0].mxu0
        %v693 = vadd.f32 0.0, %v692
        %v694 = vpop.f32.mrb[0].mxu0
        %695 = vmatprep.mubr.f32.mxu0 0.0
        %v696 = vand.u32 %v324, 4294901760
        %v697 = vsub.f32 %v324, %v696
        %v698 = vand.u32 %v697, 4294901760
        %v699 = vsub.f32 %v697, %v698
        %v700 = vand.u32 %v699, 4294901760
        %701 = vmatmul.mubr.f32.gmra.mrb[0].mxu0 %v700
        %v702 = vpop.f32.mrb[0].mxu0
        %v703 = vadd.f32 0.0, %v702
        %v704 = vpop.f32.mrb[0].mxu0
        %705 = vmatprep.mubr.f32.mxu0 0.0
        %v706 = vand.u32 %v327, 4294901760
        %v707 = vsub.f32 %v327, %v706
        %v708 = vand.u32 %v707, 4294901760
        %v709 = vsub.f32 %v707, %v708
        %v710 = vand.u32 %v709, 4294901760
        %711 = vmatmul.mubr.f32.gmra.mrb[0].mxu0 %v710
        %v712 = vpop.f32.mrb[0].mxu0
        %v713 = vadd.f32 0.0, %v712
        %v714 = vpop.f32.mrb[0].mxu0
        %715 = vdwg.mxu0
        %716 = vmatprep.subr.mxu0 0.0
        %v717 = vand.u32 %v230, 4294901760
        %v718 = vsub.f32 %v230, %v717
        %v719 = vand.u32 %v718, 4294901760
        %v720 = vsub.f32 %v718, %v719
        %v721 = vand.u32 %v720, 4294901760
        %722 = vmatpush1.msra.mxu0 %v721
        %723 = vmatprep.subr.mxu0 0.0
        %v724 = vand.u32 %v231, 4294901760
        %v725 = vsub.f32 %v231, %v724
        %v726 = vand.u32 %v725, 4294901760
        %v727 = vsub.f32 %v725, %v726
        %v728 = vand.u32 %v727, 4294901760
        %729 = vmatpush1.msra.mxu0 %v728
        %730 = vmatprep.subr.mxu0 0.0
        %731 = vmatpush1.msra.mxu0 0.0
        %732 = vmatprep.subr.mxu0 0.0
        %733 = vmatpush1.msra.mxu0 0.0
        %734 = vmatprep.subr.mxu0 0.0
        %735 = vmatpush1.msra.mxu0 0.0
        %736 = vmatprep.subr.mxu0 0.0
        %737 = vmatpush1.msra.mxu0 0.0
        %738 = vmatprep.subr.mxu0 0.0
        %739 = vmatpush1.msra.mxu0 0.0
        %740 = vmatprep.subr.mxu0 0.0
        %741 = vmatpush1.msra.mxu0 0.0
        %742 = vmatprep.subr.mxu0 0.0
        %743 = vmatpush1.msra.mxu0 0.0
        %744 = vmatprep.subr.mxu0 0.0
        %745 = vmatpush1.msra.mxu0 0.0
        %746 = vmatprep.subr.mxu0 0.0
        %747 = vmatpush1.msra.mxu0 0.0
        %748 = vmatprep.subr.mxu0 0.0
        %749 = vmatpush1.msra.mxu0 0.0
        %750 = vmatprep.subr.mxu0 0.0
        %751 = vmatpush1.msra.mxu0 0.0
        %752 = vmatprep.subr.mxu0 0.0
        %753 = vmatpush1.msra.mxu0 0.0
        %754 = vmatprep.subr.mxu0 0.0
        %755 = vmatpush1.msra.mxu0 0.0
        %756 = vmatprep.subr.mxu0 0.0
        %757 = vmatpush1.msra.mxu0 0.0
        %758 = vmatprep.subr.mxu0 0.0
        %759 = vmatpush1.msra.mxu0 0.0
        %760 = vmatprep.subr.mxu0 0.0
        %761 = vmatpush1.msra.mxu0 0.0
        %762 = vmatprep.subr.mxu0 0.0
        %763 = vmatpush1.msra.mxu0 0.0
        %764 = vmatprep.subr.mxu0 0.0
        %765 = vmatpush1.msra.mxu0 0.0
        %766 = vmatprep.subr.mxu0 0.0
        %767 = vmatpush1.msra.mxu0 0.0
        %768 = vmatprep.subr.mxu0 0.0
        %769 = vmatpush1.msra.mxu0 0.0
        %770 = vmatprep.subr.mxu0 0.0
        %771 = vmatpush1.msra.mxu0 0.0
        %772 = vmatprep.subr.mxu0 0.0
        %773 = vmatpush1.msra.mxu0 0.0
        %774 = vmatprep.subr.mxu0 0.0
        %775 = vmatpush1.msra.mxu0 0.0
        %776 = vmatprep.subr.mxu0 0.0
        %777 = vmatpush1.msra.mxu0 0.0
        %778 = vmatprep.subr.mxu0 0.0
        %779 = vmatpush1.msra.mxu0 0.0
        %780 = vmatprep.subr.mxu0 0.0
        %781 = vmatpush1.msra.mxu0 0.0
        %782 = vmatprep.subr.mxu0 0.0
        %783 = vmatpush1.msra.mxu0 0.0
        %784 = vmatprep.subr.mxu0 0.0
        %785 = vmatpush1.msra.mxu0 0.0
        %786 = vmatprep.subr.mxu0 0.0
        %787 = vmatpush1.msra.mxu0 0.0
        %788 = vmatprep.subr.mxu0 0.0
        %789 = vmatpush1.msra.mxu0 0.0
        %790 = vmatprep.mubr.f32.mxu0 0.0
        %v791 = vand.u32 %v234, 4294901760
        %792 = vmatmul.mubr.f32.gmra.mrb[0].mxu0 %v791
        %v793 = vpop.f32.mrb[0].mxu0
        %v794 = vadd.f32 %v403, %v793
        %v795 = vpop.f32.mrb[0].mxu0
        %796 = vmatprep.mubr.f32.mxu0 0.0
        %v797 = vand.u32 %v237, 4294901760
        %798 = vmatmul.mubr.f32.gmra.mrb[0].mxu0 %v797
        %v799 = vpop.f32.mrb[0].mxu0
        %v800 = vadd.f32 %v413, %v799
        %v801 = vpop.f32.mrb[0].mxu0
        %802 = vmatprep.mubr.f32.mxu0 0.0
        %v803 = vand.u32 %v240, 4294901760
        %804 = vmatmul.mubr.f32.gmra.mrb[0].mxu0 %v803
        %v805 = vpop.f32.mrb[0].mxu0
        %v806 = vadd.f32 %v423, %v805
        %v807 = vpop.f32.mrb[0].mxu0
        %808 = vmatprep.mubr.f32.mxu0 0.0
        %v809 = vand.u32 %v243, 4294901760
        %810 = vmatmul.mubr.f32.gmra.mrb[0].mxu0 %v809
        %v811 = vpop.f32.mrb[0].mxu0
        %v812 = vadd.f32 %v433, %v811
        %v813 = vpop.f32.mrb[0].mxu0
        %814 = vmatprep.mubr.f32.mxu0 0.0
        %v815 = vand.u32 %v246, 4294901760
        %816 = vmatmul.mubr.f32.gmra.mrb[0].mxu0 %v815
        %v817 = vpop.f32.mrb[0].mxu0
        %v818 = vadd.f32 %v443, %v817
        %v819 = vpop.f32.mrb[0].mxu0
        %820 = vmatprep.mubr.f32.mxu0 0.0
        %v821 = vand.u32 %v249, 4294901760
        %822 = vmatmul.mubr.f32.gmra.mrb[0].mxu0 %v821
        %v823 = vpop.f32.mrb[0].mxu0
        %v824 = vadd.f32 %v453, %v823
        %v825 = vpop.f32.mrb[0].mxu0
        %826 = vmatprep.mubr.f32.mxu0 0.0
        %v827 = vand.u32 %v252, 4294901760
        %828 = vmatmul.mubr.f32.gmra.mrb[0].mxu0 %v827
        %v829 = vpop.f32.mrb[0].mxu0
        %v830 = vadd.f32 %v463, %v829
        %v831 = vpop.f32.mrb[0].mxu0
        %832 = vmatprep.mubr.f32.mxu0 0.0
        %v833 = vand.u32 %v255, 4294901760
        %834 = vmatmul.mubr.f32.gmra.mrb[0].mxu0 %v833
        %v835 = vpop.f32.mrb[0].mxu0
        %v836 = vadd.f32 %v473, %v835
        %v837 = vpop.f32.mrb[0].mxu0
        %838 = vmatprep.mubr.f32.mxu0 0.0
        %v839 = vand.u32 %v258, 4294901760
        %840 = vmatmul.mubr.f32.gmra.mrb[0].mxu0 %v839
        %v841 = vpop.f32.mrb[0].mxu0
        %v842 = vadd.f32 %v483, %v841
        %v843 = vpop.f32.mrb[0].mxu0
        %844 = vmatprep.mubr.f32.mxu0 0.0
        %v845 = vand.u32 %v261, 4294901760
        %846 = vmatmul.mubr.f32.gmra.mrb[0].mxu0 %v845
        %v847 = vpop.f32.mrb[0].mxu0
        %v848 = vadd.f32 %v493, %v847
        %v849 = vpop.f32.mrb[0].mxu0
        %850 = vmatprep.mubr.f32.mxu0 0.0
        %v851 = vand.u32 %v264, 4294901760
        %852 = vmatmul.mubr.f32.gmra.mrb[0].mxu0 %v851
        %v853 = vpop.f32.mrb[0].mxu0
        %v854 = vadd.f32 %v503, %v853
        %v855 = vpop.f32.mrb[0].mxu0
        %856 = vmatprep.mubr.f32.mxu0 0.0
        %v857 = vand.u32 %v267, 4294901760
        %858 = vmatmul.mubr.f32.gmra.mrb[0].mxu0 %v857
        %v859 = vpop.f32.mrb[0].mxu0
        %v860 = vadd.f32 %v513, %v859
        %v861 = vpop.f32.mrb[0].mxu0
        %862 = vmatprep.mubr.f32.mxu0 0.0
        %v863 = vand.u32 %v270, 4294901760
        %864 = vmatmul.mubr.f32.gmra.mrb[0].mxu0 %v863
        %v865 = vpop.f32.mrb[0].mxu0
        %v866 = vadd.f32 %v523, %v865
        %v867 = vpop.f32.mrb[0].mxu0
        %868 = vmatprep.mubr.f32.mxu0 0.0
        %v869 = vand.u32 %v273, 4294901760
        %870 = vmatmul.mubr.f32.gmra.mrb[0].mxu0 %v869
        %v871 = vpop.f32.mrb[0].mxu0
        %v872 = vadd.f32 %v533, %v871
        %v873 = vpop.f32.mrb[0].mxu0
        %874 = vmatprep.mubr.f32.mxu0 0.0
        %v875 = vand.u32 %v276, 4294901760
        %876 = vmatmul.mubr.f32.gmra.mrb[0].mxu0 %v875
        %v877 = vpop.f32.mrb[0].mxu0
        %v878 = vadd.f32 %v543, %v877
        %v879 = vpop.f32.mrb[0].mxu0
        %880 = vmatprep.mubr.f32.mxu0 0.0
        %v881 = vand.u32 %v279, 4294901760
        %882 = vmatmul.mubr.f32.gmra.mrb[0].mxu0 %v881
        %v883 = vpop.f32.mrb[0].mxu0
        %v884 = vadd.f32 %v553, %v883
        %v885 = vpop.f32.mrb[0].mxu0
        %886 = vmatprep.mubr.f32.mxu0 0.0
        %v887 = vand.u32 %v282, 4294901760
        %888 = vmatmul.mubr.f32.gmra.mrb[0].mxu0 %v887
        %v889 = vpop.f32.mrb[0].mxu0
        %v890 = vadd.f32 %v563, %v889
        %v891 = vpop.f32.mrb[0].mxu0
        %892 = vmatprep.mubr.f32.mxu0 0.0
        %v893 = vand.u32 %v285, 4294901760
        %894 = vmatmul.mubr.f32.gmra.mrb[0].mxu0 %v893
        %v895 = vpop.f32.mrb[0].mxu0
        %v896 = vadd.f32 %v573, %v895
        %v897 = vpop.f32.mrb[0].mxu0
        %898 = vmatprep.mubr.f32.mxu0 0.0
        %v899 = vand.u32 %v288, 4294901760
        %900 = vmatmul.mubr.f32.gmra.mrb[0].mxu0 %v899
        %v901 = vpop.f32.mrb[0].mxu0
        %v902 = vadd.f32 %v583, %v901
        %v903 = vpop.f32.mrb[0].mxu0
        %904 = vmatprep.mubr.f32.mxu0 0.0
        %v905 = vand.u32 %v291, 4294901760
        %906 = vmatmul.mubr.f32.gmra.mrb[0].mxu0 %v905
        %v907 = vpop.f32.mrb[0].mxu0
        %v908 = vadd.f32 %v593, %v907
        %v909 = vpop.f32.mrb[0].mxu0
        %910 = vmatprep.mubr.f32.mxu0 0.0
        %v911 = vand.u32 %v294, 4294901760
        %912 = vmatmul.mubr.f32.gmra.mrb[0].mxu0 %v911
        %v913 = vpop.f32.mrb[0].mxu0
        %v914 = vadd.f32 %v603, %v913
        %v915 = vpop.f32.mrb[0].mxu0
        %916 = vmatprep.mubr.f32.mxu0 0.0
        %v917 = vand.u32 %v297, 4294901760
        %918 = vmatmul.mubr.f32.gmra.mrb[0].mxu0 %v917
        %v919 = vpop.f32.mrb[0].mxu0
        %v920 = vadd.f32 %v613, %v919
        %v921 = vpop.f32.mrb[0].mxu0
        %922 = vmatprep.mubr.f32.mxu0 0.0
        %v923 = vand.u32 %v300, 4294901760
        %924 = vmatmul.mubr.f32.gmra.mrb[0].mxu0 %v923
        %v925 = vpop.f32.mrb[0].mxu0
        %v926 = vadd.f32 %v623, %v925
        %v927 = vpop.f32.mrb[0].mxu0
        %928 = vmatprep.mubr.f32.mxu0 0.0
        %v929 = vand.u32 %v303, 4294901760
        %930 = vmatmul.mubr.f32.gmra.mrb[0].mxu0 %v929
        %v931 = vpop.f32.mrb[0].mxu0
        %v932 = vadd.f32 %v633, %v931
        %v933 = vpop.f32.mrb[0].mxu0
        %934 = vmatprep.mubr.f32.mxu0 0.0
        %v935 = vand.u32 %v306, 4294901760
        %936 = vmatmul.mubr.f32.gmra.mrb[0].mxu0 %v935
        %v937 = vpop.f32.mrb[0].mxu0
        %v938 = vadd.f32 %v643, %v937
        %v939 = vpop.f32.mrb[0].mxu0
        %940 = vmatprep.mubr.f32.mxu0 0.0
        %v941 = vand.u32 %v309, 4294901760
        %942 = vmatmul.mubr.f32.gmra.mrb[0].mxu0 %v941
        %v943 = vpop.f32.mrb[0].mxu0
        %v944 = vadd.f32 %v653, %v943
        %v945 = vpop.f32.mrb[0].mxu0
        %946 = vmatprep.mubr.f32.mxu0 0.0
        %v947 = vand.u32 %v312, 4294901760
        %948 = vmatmul.mubr.f32.gmra.mrb[0].mxu0 %v947
        %v949 = vpop.f32.mrb[0].mxu0
        %v950 = vadd.f32 %v663, %v949
        %v951 = vpop.f32.mrb[0].mxu0
        %952 = vmatprep.mubr.f32.mxu0 0.0
        %v953 = vand.u32 %v315, 4294901760
        %954 = vmatmul.mubr.f32.gmra.mrb[0].mxu0 %v953
        %v955 = vpop.f32.mrb[0].mxu0
        %v956 = vadd.f32 %v673, %v955
        %v957 = vpop.f32.mrb[0].mxu0
        %958 = vmatprep.mubr.f32.mxu0 0.0
        %v959 = vand.u32 %v318, 4294901760
        %960 = vmatmul.mubr.f32.gmra.mrb[0].mxu0 %v959
        %v961 = vpop.f32.mrb[0].mxu0
        %v962 = vadd.f32 %v683, %v961
        %v963 = vpop.f32.mrb[0].mxu0
        %964 = vmatprep.mubr.f32.mxu0 0.0
        %v965 = vand.u32 %v321, 4294901760
        %966 = vmatmul.mubr.f32.gmra.mrb[0].mxu0 %v965
        %v967 = vpop.f32.mrb[0].mxu0
        %v968 = vadd.f32 %v693, %v967
        %v969 = vpop.f32.mrb[0].mxu0
        %970 = vmatprep.mubr.f32.mxu0 0.0
        %v971 = vand.u32 %v324, 4294901760
        %972 = vmatmul.mubr.f32.gmra.mrb[0].mxu0 %v971
        %v973 = vpop.f32.mrb[0].mxu0
        %v974 = vadd.f32 %v703, %v973
        %v975 = vpop.f32.mrb[0].mxu0
        %976 = vmatprep.mubr.f32.mxu0 0.0
        %v977 = vand.u32 %v327, 4294901760
        %978 = vmatmul.mubr.f32.gmra.mrb[0].mxu0 %v977
        %v979 = vpop.f32.mrb[0].mxu0
        %v980 = vadd.f32 %v713, %v979
        %v981 = vpop.f32.mrb[0].mxu0
        %982 = vdwg.mxu0
        %983 = vmatprep.subr.mxu0 0.0
        %v984 = vand.u32 %v230, 4294901760
        %v985 = vsub.f32 %v230, %v984
        %986 = vmatpush1.msra.mxu0 %v985
        %987 = vmatprep.subr.mxu0 0.0
        %v988 = vand.u32 %v231, 4294901760
        %v989 = vsub.f32 %v231, %v988
        %990 = vmatpush1.msra.mxu0 %v989
        %991 = vmatprep.subr.mxu0 0.0
        %992 = vmatpush1.msra.mxu0 0.0
        %993 = vmatprep.subr.mxu0 0.0
        %994 = vmatpush1.msra.mxu0 0.0
        %995 = vmatprep.subr.mxu0 0.0
        %996 = vmatpush1.msra.mxu0 0.0
        %997 = vmatprep.subr.mxu0 0.0
        %998 = vmatpush1.msra.mxu0 0.0
        %999 = vmatprep.subr.mxu0 0.0
        %1000 = vmatpush1.msra.mxu0 0.0
        %1001 = vmatprep.subr.mxu0 0.0
        %1002 = vmatpush1.msra.mxu0 0.0
        %1003 = vmatprep.subr.mxu0 0.0
        %1004 = vmatpush1.msra.mxu0 0.0
        %1005 = vmatprep.subr.mxu0 0.0
        %1006 = vmatpush1.msra.mxu0 0.0
        %1007 = vmatprep.subr.mxu0 0.0
        %1008 = vmatpush1.msra.mxu0 0.0
        %1009 = vmatprep.subr.mxu0 0.0
        %1010 = vmatpush1.msra.mxu0 0.0
        %1011 = vmatprep.subr.mxu0 0.0
        %1012 = vmatpush1.msra.mxu0 0.0
        %1013 = vmatprep.subr.mxu0 0.0
        %1014 = vmatpush1.msra.mxu0 0.0
        %1015 = vmatprep.subr.mxu0 0.0
        %1016 = vmatpush1.msra.mxu0 0.0
        %1017 = vmatprep.subr.mxu0 0.0
        %1018 = vmatpush1.msra.mxu0 0.0
        %1019 = vmatprep.subr.mxu0 0.0
        %1020 = vmatpush1.msra.mxu0 0.0
        %1021 = vmatprep.subr.mxu0 0.0
        %1022 = vmatpush1.msra.mxu0 0.0
        %1023 = vmatprep.subr.mxu0 0.0
        %1024 = vmatpush1.msra.mxu0 0.0
        %1025 = vmatprep.subr.mxu0 0.0
        %1026 = vmatpush1.msra.mxu0 0.0
        %1027 = vmatprep.subr.mxu0 0.0
        %1028 = vmatpush1.msra.mxu0 0.0
        %1029 = vmatprep.subr.mxu0 0.0
        %1030 = vmatpush1.msra.mxu0 0.0
        %1031 = vmatprep.subr.mxu0 0.0
        %1032 = vmatpush1.msra.mxu0 0.0
        %1033 = vmatprep.subr.mxu0 0.0
        %1034 = vmatpush1.msra.mxu0 0.0
        %1035 = vmatprep.subr.mxu0 0.0
        %1036 = vmatpush1.msra.mxu0 0.0
        %1037 = vmatprep.subr.mxu0 0.0
        %1038 = vmatpush1.msra.mxu0 0.0
        %1039 = vmatprep.subr.mxu0 0.0
        %1040 = vmatpush1.msra.mxu0 0.0
        %1041 = vmatprep.subr.mxu0 0.0
        %1042 = vmatpush1.msra.mxu0 0.0
        %1043 = vmatprep.subr.mxu0 0.0
        %1044 = vmatpush1.msra.mxu0 0.0
        %1045 = vmatprep.subr.mxu0 0.0
        %1046 = vmatpush1.msra.mxu0 0.0
        %1047 = vmatprep.subr.mxu0 0.0
        %1048 = vmatpush1.msra.mxu0 0.0
        %1049 = vmatprep.subr.mxu0 0.0
        %1050 = vmatpush1.msra.mxu0 0.0
        %1051 = vmatprep.mubr.f32.mxu0 0.0
        %v1052 = vand.u32 %v234, 4294901760
        %v1053 = vsub.f32 %v234, %v1052
        %1054 = vmatmul.mubr.f32.gmra.mrb[0].mxu0 %v1053
        %v1055 = vpop.f32.mrb[0].mxu0
        %v1056 = vadd.f32 %v794, %v1055
        %v1057 = vpop.f32.mrb[0].mxu0
        %1058 = vmatprep.mubr.f32.mxu0 0.0
        %v1059 = vand.u32 %v237, 4294901760
        %v1060 = vsub.f32 %v237, %v1059
        %1061 = vmatmul.mubr.f32.gmra.mrb[0].mxu0 %v1060
        %v1062 = vpop.f32.mrb[0].mxu0
        %v1063 = vadd.f32 %v800, %v1062
        %v1064 = vpop.f32.mrb[0].mxu0
        %1065 = vmatprep.mubr.f32.mxu0 0.0
        %v1066 = vand.u32 %v240, 4294901760
        %v1067 = vsub.f32 %v240, %v1066
        %1068 = vmatmul.mubr.f32.gmra.mrb[0].mxu0 %v1067
        %v1069 = vpop.f32.mrb[0].mxu0
        %v1070 = vadd.f32 %v806, %v1069
        %v1071 = vpop.f32.mrb[0].mxu0
        %1072 = vmatprep.mubr.f32.mxu0 0.0
        %v1073 = vand.u32 %v243, 4294901760
        %v1074 = vsub.f32 %v243, %v1073
        %1075 = vmatmul.mubr.f32.gmra.mrb[0].mxu0 %v1074
        %v1076 = vpop.f32.mrb[0].mxu0
        %v1077 = vadd.f32 %v812, %v1076
        %v1078 = vpop.f32.mrb[0].mxu0
        %1079 = vmatprep.mubr.f32.mxu0 0.0
        %v1080 = vand.u32 %v246, 4294901760
        %v1081 = vsub.f32 %v246, %v1080
        %1082 = vmatmul.mubr.f32.gmra.mrb[0].mxu0 %v1081
        %v1083 = vpop.f32.mrb[0].mxu0
        %v1084 = vadd.f32 %v818, %v1083
        %v1085 = vpop.f32.mrb[0].mxu0
        %1086 = vmatprep.mubr.f32.mxu0 0.0
        %v1087 = vand.u32 %v249, 4294901760
        %v1088 = vsub.f32 %v249, %v1087
        %1089 = vmatmul.mubr.f32.gmra.mrb[0].mxu0 %v1088
        %v1090 = vpop.f32.mrb[0].mxu0
        %v1091 = vadd.f32 %v824, %v1090
        %v1092 = vpop.f32.mrb[0].mxu0
        %1093 = vmatprep.mubr.f32.mxu0 0.0
        %v1094 = vand.u32 %v252, 4294901760
        %v1095 = vsub.f32 %v252, %v1094
        %1096 = vmatmul.mubr.f32.gmra.mrb[0].mxu0 %v1095
        %v1097 = vpop.f32.mrb[0].mxu0
        %v1098 = vadd.f32 %v830, %v1097
        %v1099 = vpop.f32.mrb[0].mxu0
        %1100 = vmatprep.mubr.f32.mxu0 0.0
        %v1101 = vand.u32 %v255, 4294901760
        %v1102 = vsub.f32 %v255, %v1101
        %1103 = vmatmul.mubr.f32.gmra.mrb[0].mxu0 %v1102
        %v1104 = vpop.f32.mrb[0].mxu0
        %v1105 = vadd.f32 %v836, %v1104
        %v1106 = vpop.f32.mrb[0].mxu0
        %1107 = vmatprep.mubr.f32.mxu0 0.0
        %v1108 = vand.u32 %v258, 4294901760
        %v1109 = vsub.f32 %v258, %v1108
        %1110 = vmatmul.mubr.f32.gmra.mrb[0].mxu0 %v1109
        %v1111 = vpop.f32.mrb[0].mxu0
        %v1112 = vadd.f32 %v842, %v1111
        %v1113 = vpop.f32.mrb[0].mxu0
        %1114 = vmatprep.mubr.f32.mxu0 0.0
        %v1115 = vand.u32 %v261, 4294901760
        %v1116 = vsub.f32 %v261, %v1115
        %1117 = vmatmul.mubr.f32.gmra.mrb[0].mxu0 %v1116
        %v1118 = vpop.f32.mrb[0].mxu0
        %v1119 = vadd.f32 %v848, %v1118
        %v1120 = vpop.f32.mrb[0].mxu0
        %1121 = vmatprep.mubr.f32.mxu0 0.0
        %v1122 = vand.u32 %v264, 4294901760
        %v1123 = vsub.f32 %v264, %v1122
        %1124 = vmatmul.mubr.f32.gmra.mrb[0].mxu0 %v1123
        %v1125 = vpop.f32.mrb[0].mxu0
        %v1126 = vadd.f32 %v854, %v1125
        %v1127 = vpop.f32.mrb[0].mxu0
        %1128 = vmatprep.mubr.f32.mxu0 0.0
        %v1129 = vand.u32 %v267, 4294901760
        %v1130 = vsub.f32 %v267, %v1129
        %1131 = vmatmul.mubr.f32.gmra.mrb[0].mxu0 %v1130
        %v1132 = vpop.f32.mrb[0].mxu0
        %v1133 = vadd.f32 %v860, %v1132
        %v1134 = vpop.f32.mrb[0].mxu0
        %1135 = vmatprep.mubr.f32.mxu0 0.0
        %v1136 = vand.u32 %v270, 4294901760
        %v1137 = vsub.f32 %v270, %v1136
        %1138 = vmatmul.mubr.f32.gmra.mrb[0].mxu0 %v1137
        %v1139 = vpop.f32.mrb[0].mxu0
        %v1140 = vadd.f32 %v866, %v1139
        %v1141 = vpop.f32.mrb[0].mxu0
        %1142 = vmatprep.mubr.f32.mxu0 0.0
        %v1143 = vand.u32 %v273, 4294901760
        %v1144 = vsub.f32 %v273, %v1143
        %1145 = vmatmul.mubr.f32.gmra.mrb[0].mxu0 %v1144
        %v1146 = vpop.f32.mrb[0].mxu0
        %v1147 = vadd.f32 %v872, %v1146
        %v1148 = vpop.f32.mrb[0].mxu0
        %1149 = vmatprep.mubr.f32.mxu0 0.0
        %v1150 = vand.u32 %v276, 4294901760
        %v1151 = vsub.f32 %v276, %v1150
        %1152 = vmatmul.mubr.f32.gmra.mrb[0].mxu0 %v1151
        %v1153 = vpop.f32.mrb[0].mxu0
        %v1154 = vadd.f32 %v878, %v1153
        %v1155 = vpop.f32.mrb[0].mxu0
        %1156 = vmatprep.mubr.f32.mxu0 0.0
        %v1157 = vand.u32 %v279, 4294901760
        %v1158 = vsub.f32 %v279, %v1157
        %1159 = vmatmul.mubr.f32.gmra.mrb[0].mxu0 %v1158
        %v1160 = vpop.f32.mrb[0].mxu0
        %v1161 = vadd.f32 %v884, %v1160
        %v1162 = vpop.f32.mrb[0].mxu0
        %1163 = vmatprep.mubr.f32.mxu0 0.0
        %v1164 = vand.u32 %v282, 4294901760
        %v1165 = vsub.f32 %v282, %v1164
        %1166 = vmatmul.mubr.f32.gmra.mrb[0].mxu0 %v1165
        %v1167 = vpop.f32.mrb[0].mxu0
        %v1168 = vadd.f32 %v890, %v1167
        %v1169 = vpop.f32.mrb[0].mxu0
        %1170 = vmatprep.mubr.f32.mxu0 0.0
        %v1171 = vand.u32 %v285, 4294901760
        %v1172 = vsub.f32 %v285, %v1171
        %1173 = vmatmul.mubr.f32.gmra.mrb[0].mxu0 %v1172
        %v1174 = vpop.f32.mrb[0].mxu0
        %v1175 = vadd.f32 %v896, %v1174
        %v1176 = vpop.f32.mrb[0].mxu0
        %1177 = vmatprep.mubr.f32.mxu0 0.0
        %v1178 = vand.u32 %v288, 4294901760
        %v1179 = vsub.f32 %v288, %v1178
        %1180 = vmatmul.mubr.f32.gmra.mrb[0].mxu0 %v1179
        %v1181 = vpop.f32.mrb[0].mxu0
        %v1182 = vadd.f32 %v902, %v1181
        %v1183 = vpop.f32.mrb[0].mxu0
        %1184 = vmatprep.mubr.f32.mxu0 0.0
        %v1185 = vand.u32 %v291, 4294901760
        %v1186 = vsub.f32 %v291, %v1185
        %1187 = vmatmul.mubr.f32.gmra.mrb[0].mxu0 %v1186
        %v1188 = vpop.f32.mrb[0].mxu0
        %v1189 = vadd.f32 %v908, %v1188
        %v1190 = vpop.f32.mrb[0].mxu0
        %1191 = vmatprep.mubr.f32.mxu0 0.0
        %v1192 = vand.u32 %v294, 4294901760
        %v1193 = vsub.f32 %v294, %v1192
        %1194 = vmatmul.mubr.f32.gmra.mrb[0].mxu0 %v1193
        %v1195 = vpop.f32.mrb[0].mxu0
        %v1196 = vadd.f32 %v914, %v1195
        %v1197 = vpop.f32.mrb[0].mxu0
        %1198 = vmatprep.mubr.f32.mxu0 0.0
        %v1199 = vand.u32 %v297, 4294901760
        %v1200 = vsub.f32 %v297, %v1199
        %1201 = vmatmul.mubr.f32.gmra.mrb[0].mxu0 %v1200
        %v1202 = vpop.f32.mrb[0].mxu0
        %v1203 = vadd.f32 %v920, %v1202
        %v1204 = vpop.f32.mrb[0].mxu0
        %1205 = vmatprep.mubr.f32.mxu0 0.0
        %v1206 = vand.u32 %v300, 4294901760
        %v1207 = vsub.f32 %v300, %v1206
        %1208 = vmatmul.mubr.f32.gmra.mrb[0].mxu0 %v1207
        %v1209 = vpop.f32.mrb[0].mxu0
        %v1210 = vadd.f32 %v926, %v1209
        %v1211 = vpop.f32.mrb[0].mxu0
        %1212 = vmatprep.mubr.f32.mxu0 0.0
        %v1213 = vand.u32 %v303, 4294901760
        %v1214 = vsub.f32 %v303, %v1213
        %1215 = vmatmul.mubr.f32.gmra.mrb[0].mxu0 %v1214
        %v1216 = vpop.f32.mrb[0].mxu0
        %v1217 = vadd.f32 %v932, %v1216
        %v1218 = vpop.f32.mrb[0].mxu0
        %1219 = vmatprep.mubr.f32.mxu0 0.0
        %v1220 = vand.u32 %v306, 4294901760
        %v1221 = vsub.f32 %v306, %v1220
        %1222 = vmatmul.mubr.f32.gmra.mrb[0].mxu0 %v1221
        %v1223 = vpop.f32.mrb[0].mxu0
        %v1224 = vadd.f32 %v938, %v1223
        %v1225 = vpop.f32.mrb[0].mxu0
        %1226 = vmatprep.mubr.f32.mxu0 0.0
        %v1227 = vand.u32 %v309, 4294901760
        %v1228 = vsub.f32 %v309, %v1227
        %1229 = vmatmul.mubr.f32.gmra.mrb[0].mxu0 %v1228
        %v1230 = vpop.f32.mrb[0].mxu0
        %v1231 = vadd.f32 %v944, %v1230
        %v1232 = vpop.f32.mrb[0].mxu0
        %1233 = vmatprep.mubr.f32.mxu0 0.0
        %v1234 = vand.u32 %v312, 4294901760
        %v1235 = vsub.f32 %v312, %v1234
        %1236 = vmatmul.mubr.f32.gmra.mrb[0].mxu0 %v1235
        %v1237 = vpop.f32.mrb[0].mxu0
        %v1238 = vadd.f32 %v950, %v1237
        %v1239 = vpop.f32.mrb[0].mxu0
        %1240 = vmatprep.mubr.f32.mxu0 0.0
        %v1241 = vand.u32 %v315, 4294901760
        %v1242 = vsub.f32 %v315, %v1241
        %1243 = vmatmul.mubr.f32.gmra.mrb[0].mxu0 %v1242
        %v1244 = vpop.f32.mrb[0].mxu0
        %v1245 = vadd.f32 %v956, %v1244
        %v1246 = vpop.f32.mrb[0].mxu0
        %1247 = vmatprep.mubr.f32.mxu0 0.0
        %v1248 = vand.u32 %v318, 4294901760
        %v1249 = vsub.f32 %v318, %v1248
        %1250 = vmatmul.mubr.f32.gmra.mrb[0].mxu0 %v1249
        %v1251 = vpop.f32.mrb[0].mxu0
        %v1252 = vadd.f32 %v962, %v1251
        %v1253 = vpop.f32.mrb[0].mxu0
        %1254 = vmatprep.mubr.f32.mxu0 0.0
        %v1255 = vand.u32 %v321, 4294901760
        %v1256 = vsub.f32 %v321, %v1255
        %1257 = vmatmul.mubr.f32.gmra.mrb[0].mxu0 %v1256
        %v1258 = vpop.f32.mrb[0].mxu0
        %v1259 = vadd.f32 %v968, %v1258
        %v1260 = vpop.f32.mrb[0].mxu0
        %1261 = vmatprep.mubr.f32.mxu0 0.0
        %v1262 = vand.u32 %v324, 4294901760
        %v1263 = vsub.f32 %v324, %v1262
        %1264 = vmatmul.mubr.f32.gmra.mrb[0].mxu0 %v1263
        %v1265 = vpop.f32.mrb[0].mxu0
        %v1266 = vadd.f32 %v974, %v1265
        %v1267 = vpop.f32.mrb[0].mxu0
        %1268 = vmatprep.mubr.f32.mxu0 0.0
        %v1269 = vand.u32 %v327, 4294901760
        %v1270 = vsub.f32 %v327, %v1269
        %1271 = vmatmul.mubr.f32.gmra.mrb[0].mxu0 %v1270
        %v1272 = vpop.f32.mrb[0].mxu0
        %v1273 = vadd.f32 %v980, %v1272
        %v1274 = vpop.f32.mrb[0].mxu0
        %1275 = vdwg.mxu0
        %1276 = vmatprep.subr.mxu0 0.0
        %v1277 = vand.u32 %v230, 4294901760
        %1278 = vmatpush1.msra.mxu0 %v1277
        %1279 = vmatprep.subr.mxu0 0.0
        %v1280 = vand.u32 %v231, 4294901760
        %1281 = vmatpush1.msra.mxu0 %v1280
        %1282 = vmatprep.subr.mxu0 0.0
        %1283 = vmatpush1.msra.mxu0 0.0
        %1284 = vmatprep.subr.mxu0 0.0
        %1285 = vmatpush1.msra.mxu0 0.0
        %1286 = vmatprep.subr.mxu0 0.0
        %1287 = vmatpush1.msra.mxu0 0.0
        %1288 = vmatprep.subr.mxu0 0.0
        %1289 = vmatpush1.msra.mxu0 0.0
        %1290 = vmatprep.subr.mxu0 0.0
        %1291 = vmatpush1.msra.mxu0 0.0
        %1292 = vmatprep.subr.mxu0 0.0
        %1293 = vmatpush1.msra.mxu0 0.0
        %1294 = vmatprep.subr.mxu0 0.0
        %1295 = vmatpush1.msra.mxu0 0.0
        %1296 = vmatprep.subr.mxu0 0.0
        %1297 = vmatpush1.msra.mxu0 0.0
        %1298 = vmatprep.subr.mxu0 0.0
        %1299 = vmatpush1.msra.mxu0 0.0
        %1300 = vmatprep.subr.mxu0 0.0
        %1301 = vmatpush1.msra.mxu0 0.0
        %1302 = vmatprep.subr.mxu0 0.0
        %1303 = vmatpush1.msra.mxu0 0.0
        %1304 = vmatprep.subr.mxu0 0.0
        %1305 = vmatpush1.msra.mxu0 0.0
        %1306 = vmatprep.subr.mxu0 0.0
        %1307 = vmatpush1.msra.mxu0 0.0
        %1308 = vmatprep.subr.mxu0 0.0
        %1309 = vmatpush1.msra.mxu0 0.0
        %1310 = vmatprep.subr.mxu0 0.0
        %1311 = vmatpush1.msra.mxu0 0.0
        %1312 = vmatprep.subr.mxu0 0.0
        %1313 = vmatpush1.msra.mxu0 0.0
        %1314 = vmatprep.subr.mxu0 0.0
        %1315 = vmatpush1.msra.mxu0 0.0
        %1316 = vmatprep.subr.mxu0 0.0
        %1317 = vmatpush1.msra.mxu0 0.0
        %1318 = vmatprep.subr.mxu0 0.0
        %1319 = vmatpush1.msra.mxu0 0.0
        %1320 = vmatprep.subr.mxu0 0.0
        %1321 = vmatpush1.msra.mxu0 0.0
        %1322 = vmatprep.subr.mxu0 0.0
        %1323 = vmatpush1.msra.mxu0 0.0
        %1324 = vmatprep.subr.mxu0 0.0
        %1325 = vmatpush1.msra.mxu0 0.0
        %1326 = vmatprep.subr.mxu0 0.0
        %1327 = vmatpush1.msra.mxu0 0.0
        %1328 = vmatprep.subr.mxu0 0.0
        %1329 = vmatpush1.msra.mxu0 0.0
        %1330 = vmatprep.subr.mxu0 0.0
        %1331 = vmatpush1.msra.mxu0 0.0
        %1332 = vmatprep.subr.mxu0 0.0
        %1333 = vmatpush1.msra.mxu0 0.0
        %1334 = vmatprep.subr.mxu0 0.0
        %1335 = vmatpush1.msra.mxu0 0.0
        %1336 = vmatprep.subr.mxu0 0.0
        %1337 = vmatpush1.msra.mxu0 0.0
        %1338 = vmatprep.subr.mxu0 0.0
        %1339 = vmatpush1.msra.mxu0 0.0
        %1340 = vmatprep.subr.mxu0 0.0
        %1341 = vmatpush1.msra.mxu0 0.0
        %1342 = vmatprep.mubr.f32.mxu0 0.0
        %v1343 = vand.u32 %v234, 4294901760
        %v1344 = vsub.f32 %v234, %v1343
        %v1345 = vand.u32 %v1344, 4294901760
        %1346 = vmatmul.mubr.f32.gmra.mrb[0].mxu0 %v1345
        %v1347 = vpop.f32.mrb[0].mxu0
        %v1348 = vadd.f32 %v1056, %v1347
        %v1349 = vpop.f32.mrb[0].mxu0
        %1350 = vmatprep.mubr.f32.mxu0 0.0
        %v1351 = vand.u32 %v237, 4294901760
        %v1352 = vsub.f32 %v237, %v1351
        %v1353 = vand.u32 %v1352, 4294901760
        %1354 = vmatmul.mubr.f32.gmra.mrb[0].mxu0 %v1353
        %v1355 = vpop.f32.mrb[0].mxu0
        %v1356 = vadd.f32 %v1063, %v1355
        %v1357 = vpop.f32.mrb[0].mxu0
        %1358 = vmatprep.mubr.f32.mxu0 0.0
        %v1359 = vand.u32 %v240, 4294901760
        %v1360 = vsub.f32 %v240, %v1359
        %v1361 = vand.u32 %v1360, 4294901760
        %1362 = vmatmul.mubr.f32.gmra.mrb[0].mxu0 %v1361
        %v1363 = vpop.f32.mrb[0].mxu0
        %v1364 = vadd.f32 %v1070, %v1363
        %v1365 = vpop.f32.mrb[0].mxu0
        %1366 = vmatprep.mubr.f32.mxu0 0.0
        %v1367 = vand.u32 %v243, 4294901760
        %v1368 = vsub.f32 %v243, %v1367
        %v1369 = vand.u32 %v1368, 4294901760
        %1370 = vmatmul.mubr.f32.gmra.mrb[0].mxu0 %v1369
        %v1371 = vpop.f32.mrb[0].mxu0
        %v1372 = vadd.f32 %v1077, %v1371
        %v1373 = vpop.f32.mrb[0].mxu0
        %1374 = vmatprep.mubr.f32.mxu0 0.0
        %v1375 = vand.u32 %v246, 4294901760
        %v1376 = vsub.f32 %v246, %v1375
        %v1377 = vand.u32 %v1376, 4294901760
        %1378 = vmatmul.mubr.f32.gmra.mrb[0].mxu0 %v1377
        %v1379 = vpop.f32.mrb[0].mxu0
        %v1380 = vadd.f32 %v1084, %v1379
        %v1381 = vpop.f32.mrb[0].mxu0
        %1382 = vmatprep.mubr.f32.mxu0 0.0
        %v1383 = vand.u32 %v249, 4294901760
        %v1384 = vsub.f32 %v249, %v1383
        %v1385 = vand.u32 %v1384, 4294901760
        %1386 = vmatmul.mubr.f32.gmra.mrb[0].mxu0 %v1385
        %v1387 = vpop.f32.mrb[0].mxu0
        %v1388 = vadd.f32 %v1091, %v1387
        %v1389 = vpop.f32.mrb[0].mxu0
        %1390 = vmatprep.mubr.f32.mxu0 0.0
        %v1391 = vand.u32 %v252, 4294901760
        %v1392 = vsub.f32 %v252, %v1391
        %v1393 = vand.u32 %v1392, 4294901760
        %1394 = vmatmul.mubr.f32.gmra.mrb[0].mxu0 %v1393
        %v1395 = vpop.f32.mrb[0].mxu0
        %v1396 = vadd.f32 %v1098, %v1395
        %v1397 = vpop.f32.mrb[0].mxu0
        %1398 = vmatprep.mubr.f32.mxu0 0.0
        %v1399 = vand.u32 %v255, 4294901760
        %v1400 = vsub.f32 %v255, %v1399
        %v1401 = vand.u32 %v1400, 4294901760
        %1402 = vmatmul.mubr.f32.gmra.mrb[0].mxu0 %v1401
        %v1403 = vpop.f32.mrb[0].mxu0
        %v1404 = vadd.f32 %v1105, %v1403
        %v1405 = vpop.f32.mrb[0].mxu0
        %1406 = vmatprep.mubr.f32.mxu0 0.0
        %v1407 = vand.u32 %v258, 4294901760
        %v1408 = vsub.f32 %v258, %v1407
        %v1409 = vand.u32 %v1408, 4294901760
        %1410 = vmatmul.mubr.f32.gmra.mrb[0].mxu0 %v1409
        %v1411 = vpop.f32.mrb[0].mxu0
        %v1412 = vadd.f32 %v1112, %v1411
        %v1413 = vpop.f32.mrb[0].mxu0
        %1414 = vmatprep.mubr.f32.mxu0 0.0
        %v1415 = vand.u32 %v261, 4294901760
        %v1416 = vsub.f32 %v261, %v1415
        %v1417 = vand.u32 %v1416, 4294901760
        %1418 = vmatmul.mubr.f32.gmra.mrb[0].mxu0 %v1417
        %v1419 = vpop.f32.mrb[0].mxu0
        %v1420 = vadd.f32 %v1119, %v1419
        %v1421 = vpop.f32.mrb[0].mxu0
        %1422 = vmatprep.mubr.f32.mxu0 0.0
        %v1423 = vand.u32 %v264, 4294901760
        %v1424 = vsub.f32 %v264, %v1423
        %v1425 = vand.u32 %v1424, 4294901760
        %1426 = vmatmul.mubr.f32.gmra.mrb[0].mxu0 %v1425
        %v1427 = vpop.f32.mrb[0].mxu0
        %v1428 = vadd.f32 %v1126, %v1427
        %v1429 = vpop.f32.mrb[0].mxu0
        %1430 = vmatprep.mubr.f32.mxu0 0.0
        %v1431 = vand.u32 %v267, 4294901760
        %v1432 = vsub.f32 %v267, %v1431
        %v1433 = vand.u32 %v1432, 4294901760
        %1434 = vmatmul.mubr.f32.gmra.mrb[0].mxu0 %v1433
        %v1435 = vpop.f32.mrb[0].mxu0
        %v1436 = vadd.f32 %v1133, %v1435
        %v1437 = vpop.f32.mrb[0].mxu0
        %1438 = vmatprep.mubr.f32.mxu0 0.0
        %v1439 = vand.u32 %v270, 4294901760
        %v1440 = vsub.f32 %v270, %v1439
        %v1441 = vand.u32 %v1440, 4294901760
        %1442 = vmatmul.mubr.f32.gmra.mrb[0].mxu0 %v1441
        %v1443 = vpop.f32.mrb[0].mxu0
        %v1444 = vadd.f32 %v1140, %v1443
        %v1445 = vpop.f32.mrb[0].mxu0
        %1446 = vmatprep.mubr.f32.mxu0 0.0
        %v1447 = vand.u32 %v273, 4294901760
        %v1448 = vsub.f32 %v273, %v1447
        %v1449 = vand.u32 %v1448, 4294901760
        %1450 = vmatmul.mubr.f32.gmra.mrb[0].mxu0 %v1449
        %v1451 = vpop.f32.mrb[0].mxu0
        %v1452 = vadd.f32 %v1147, %v1451
        %v1453 = vpop.f32.mrb[0].mxu0
        %1454 = vmatprep.mubr.f32.mxu0 0.0
        %v1455 = vand.u32 %v276, 4294901760
        %v1456 = vsub.f32 %v276, %v1455
        %v1457 = vand.u32 %v1456, 4294901760
        %1458 = vmatmul.mubr.f32.gmra.mrb[0].mxu0 %v1457
        %v1459 = vpop.f32.mrb[0].mxu0
        %v1460 = vadd.f32 %v1154, %v1459
        %v1461 = vpop.f32.mrb[0].mxu0
        %1462 = vmatprep.mubr.f32.mxu0 0.0
        %v1463 = vand.u32 %v279, 4294901760
        %v1464 = vsub.f32 %v279, %v1463
        %v1465 = vand.u32 %v1464, 4294901760
        %1466 = vmatmul.mubr.f32.gmra.mrb[0].mxu0 %v1465
        %v1467 = vpop.f32.mrb[0].mxu0
        %v1468 = vadd.f32 %v1161, %v1467
        %v1469 = vpop.f32.mrb[0].mxu0
        %1470 = vmatprep.mubr.f32.mxu0 0.0
        %v1471 = vand.u32 %v282, 4294901760
        %v1472 = vsub.f32 %v282, %v1471
        %v1473 = vand.u32 %v1472, 4294901760
        %1474 = vmatmul.mubr.f32.gmra.mrb[0].mxu0 %v1473
        %v1475 = vpop.f32.mrb[0].mxu0
        %v1476 = vadd.f32 %v1168, %v1475
        %v1477 = vpop.f32.mrb[0].mxu0
        %1478 = vmatprep.mubr.f32.mxu0 0.0
        %v1479 = vand.u32 %v285, 4294901760
        %v1480 = vsub.f32 %v285, %v1479
        %v1481 = vand.u32 %v1480, 4294901760
        %1482 = vmatmul.mubr.f32.gmra.mrb[0].mxu0 %v1481
        %v1483 = vpop.f32.mrb[0].mxu0
        %v1484 = vadd.f32 %v1175, %v1483
        %v1485 = vpop.f32.mrb[0].mxu0
        %1486 = vmatprep.mubr.f32.mxu0 0.0
        %v1487 = vand.u32 %v288, 4294901760
        %v1488 = vsub.f32 %v288, %v1487
        %v1489 = vand.u32 %v1488, 4294901760
        %1490 = vmatmul.mubr.f32.gmra.mrb[0].mxu0 %v1489
        %v1491 = vpop.f32.mrb[0].mxu0
        %v1492 = vadd.f32 %v1182, %v1491
        %v1493 = vpop.f32.mrb[0].mxu0
        %1494 = vmatprep.mubr.f32.mxu0 0.0
        %v1495 = vand.u32 %v291, 4294901760
        %v1496 = vsub.f32 %v291, %v1495
        %v1497 = vand.u32 %v1496, 4294901760
        %1498 = vmatmul.mubr.f32.gmra.mrb[0].mxu0 %v1497
        %v1499 = vpop.f32.mrb[0].mxu0
        %v1500 = vadd.f32 %v1189, %v1499
        %v1501 = vpop.f32.mrb[0].mxu0
        %1502 = vmatprep.mubr.f32.mxu0 0.0
        %v1503 = vand.u32 %v294, 4294901760
        %v1504 = vsub.f32 %v294, %v1503
        %v1505 = vand.u32 %v1504, 4294901760
        %1506 = vmatmul.mubr.f32.gmra.mrb[0].mxu0 %v1505
        %v1507 = vpop.f32.mrb[0].mxu0
        %v1508 = vadd.f32 %v1196, %v1507
        %v1509 = vpop.f32.mrb[0].mxu0
        %1510 = vmatprep.mubr.f32.mxu0 0.0
        %v1511 = vand.u32 %v297, 4294901760
        %v1512 = vsub.f32 %v297, %v1511
        %v1513 = vand.u32 %v1512, 4294901760
        %1514 = vmatmul.mubr.f32.gmra.mrb[0].mxu0 %v1513
        %v1515 = vpop.f32.mrb[0].mxu0
        %v1516 = vadd.f32 %v1203, %v1515
        %v1517 = vpop.f32.mrb[0].mxu0
        %1518 = vmatprep.mubr.f32.mxu0 0.0
        %v1519 = vand.u32 %v300, 4294901760
        %v1520 = vsub.f32 %v300, %v1519
        %v1521 = vand.u32 %v1520, 4294901760
        %1522 = vmatmul.mubr.f32.gmra.mrb[0].mxu0 %v1521
        %v1523 = vpop.f32.mrb[0].mxu0
        %v1524 = vadd.f32 %v1210, %v1523
        %v1525 = vpop.f32.mrb[0].mxu0
        %1526 = vmatprep.mubr.f32.mxu0 0.0
        %v1527 = vand.u32 %v303, 4294901760
        %v1528 = vsub.f32 %v303, %v1527
        %v1529 = vand.u32 %v1528, 4294901760
        %1530 = vmatmul.mubr.f32.gmra.mrb[0].mxu0 %v1529
        %v1531 = vpop.f32.mrb[0].mxu0
        %v1532 = vadd.f32 %v1217, %v1531
        %v1533 = vpop.f32.mrb[0].mxu0
        %1534 = vmatprep.mubr.f32.mxu0 0.0
        %v1535 = vand.u32 %v306, 4294901760
        %v1536 = vsub.f32 %v306, %v1535
        %v1537 = vand.u32 %v1536, 4294901760
        %1538 = vmatmul.mubr.f32.gmra.mrb[0].mxu0 %v1537
        %v1539 = vpop.f32.mrb[0].mxu0
        %v1540 = vadd.f32 %v1224, %v1539
        %v1541 = vpop.f32.mrb[0].mxu0
        %1542 = vmatprep.mubr.f32.mxu0 0.0
        %v1543 = vand.u32 %v309, 4294901760
        %v1544 = vsub.f32 %v309, %v1543
        %v1545 = vand.u32 %v1544, 4294901760
        %1546 = vmatmul.mubr.f32.gmra.mrb[0].mxu0 %v1545
        %v1547 = vpop.f32.mrb[0].mxu0
        %v1548 = vadd.f32 %v1231, %v1547
        %v1549 = vpop.f32.mrb[0].mxu0
        %1550 = vmatprep.mubr.f32.mxu0 0.0
        %v1551 = vand.u32 %v312, 4294901760
        %v1552 = vsub.f32 %v312, %v1551
        %v1553 = vand.u32 %v1552, 4294901760
        %1554 = vmatmul.mubr.f32.gmra.mrb[0].mxu0 %v1553
        %v1555 = vpop.f32.mrb[0].mxu0
        %v1556 = vadd.f32 %v1238, %v1555
        %v1557 = vpop.f32.mrb[0].mxu0
        %1558 = vmatprep.mubr.f32.mxu0 0.0
        %v1559 = vand.u32 %v315, 4294901760
        %v1560 = vsub.f32 %v315, %v1559
        %v1561 = vand.u32 %v1560, 4294901760
        %1562 = vmatmul.mubr.f32.gmra.mrb[0].mxu0 %v1561
        %v1563 = vpop.f32.mrb[0].mxu0
        %v1564 = vadd.f32 %v1245, %v1563
        %v1565 = vpop.f32.mrb[0].mxu0
        %1566 = vmatprep.mubr.f32.mxu0 0.0
        %v1567 = vand.u32 %v318, 4294901760
        %v1568 = vsub.f32 %v318, %v1567
        %v1569 = vand.u32 %v1568, 4294901760
        %1570 = vmatmul.mubr.f32.gmra.mrb[0].mxu0 %v1569
        %v1571 = vpop.f32.mrb[0].mxu0
        %v1572 = vadd.f32 %v1252, %v1571
        %v1573 = vpop.f32.mrb[0].mxu0
        %1574 = vmatprep.mubr.f32.mxu0 0.0
        %v1575 = vand.u32 %v321, 4294901760
        %v1576 = vsub.f32 %v321, %v1575
        %v1577 = vand.u32 %v1576, 4294901760
        %1578 = vmatmul.mubr.f32.gmra.mrb[0].mxu0 %v1577
        %v1579 = vpop.f32.mrb[0].mxu0
        %v1580 = vadd.f32 %v1259, %v1579
        %v1581 = vpop.f32.mrb[0].mxu0
        %1582 = vmatprep.mubr.f32.mxu0 0.0
        %v1583 = vand.u32 %v324, 4294901760
        %v1584 = vsub.f32 %v324, %v1583
        %v1585 = vand.u32 %v1584, 4294901760
        %1586 = vmatmul.mubr.f32.gmra.mrb[0].mxu0 %v1585
        %v1587 = vpop.f32.mrb[0].mxu0
        %v1588 = vadd.f32 %v1266, %v1587
        %v1589 = vpop.f32.mrb[0].mxu0
        %1590 = vmatprep.mubr.f32.mxu0 0.0
        %v1591 = vand.u32 %v327, 4294901760
        %v1592 = vsub.f32 %v327, %v1591
        %v1593 = vand.u32 %v1592, 4294901760
        %1594 = vmatmul.mubr.f32.gmra.mrb[0].mxu0 %v1593
        %v1595 = vpop.f32.mrb[0].mxu0
        %v1596 = vadd.f32 %v1273, %v1595
        %v1597 = vpop.f32.mrb[0].mxu0
        %1598 = vdwg.mxu0
        %1599 = vmatprep.subr.mxu0 0.0
        %v1600 = vand.u32 %v230, 4294901760
        %v1601 = vsub.f32 %v230, %v1600
        %v1602 = vand.u32 %v1601, 4294901760
        %1603 = vmatpush1.msra.mxu0 %v1602
        %1604 = vmatprep.subr.mxu0 0.0
        %v1605 = vand.u32 %v231, 4294901760
        %v1606 = vsub.f32 %v231, %v1605
        %v1607 = vand.u32 %v1606, 4294901760
        %1608 = vmatpush1.msra.mxu0 %v1607
        %1609 = vmatprep.subr.mxu0 0.0
        %1610 = vmatpush1.msra.mxu0 0.0
        %1611 = vmatprep.subr.mxu0 0.0
        %1612 = vmatpush1.msra.mxu0 0.0
        %1613 = vmatprep.subr.mxu0 0.0
        %1614 = vmatpush1.msra.mxu0 0.0
        %1615 = vmatprep.subr.mxu0 0.0
        %1616 = vmatpush1.msra.mxu0 0.0
        %1617 = vmatprep.subr.mxu0 0.0
        %1618 = vmatpush1.msra.mxu0 0.0
        %1619 = vmatprep.subr.mxu0 0.0
        %1620 = vmatpush1.msra.mxu0 0.0
        %1621 = vmatprep.subr.mxu0 0.0
        %1622 = vmatpush1.msra.mxu0 0.0
        %1623 = vmatprep.subr.mxu0 0.0
        %1624 = vmatpush1.msra.mxu0 0.0
        %1625 = vmatprep.subr.mxu0 0.0
        %1626 = vmatpush1.msra.mxu0 0.0
        %1627 = vmatprep.subr.mxu0 0.0
        %1628 = vmatpush1.msra.mxu0 0.0
        %1629 = vmatprep.subr.mxu0 0.0
        %1630 = vmatpush1.msra.mxu0 0.0
        %1631 = vmatprep.subr.mxu0 0.0
        %1632 = vmatpush1.msra.mxu0 0.0
        %1633 = vmatprep.subr.mxu0 0.0
        %1634 = vmatpush1.msra.mxu0 0.0
        %1635 = vmatprep.subr.mxu0 0.0
        %1636 = vmatpush1.msra.mxu0 0.0
        %1637 = vmatprep.subr.mxu0 0.0
        %1638 = vmatpush1.msra.mxu0 0.0
        %1639 = vmatprep.subr.mxu0 0.0
        %1640 = vmatpush1.msra.mxu0 0.0
        %1641 = vmatprep.subr.mxu0 0.0
        %1642 = vmatpush1.msra.mxu0 0.0
        %1643 = vmatprep.subr.mxu0 0.0
        %1644 = vmatpush1.msra.mxu0 0.0
        %1645 = vmatprep.subr.mxu0 0.0
        %1646 = vmatpush1.msra.mxu0 0.0
        %1647 = vmatprep.subr.mxu0 0.0
        %1648 = vmatpush1.msra.mxu0 0.0
        %1649 = vmatprep.subr.mxu0 0.0
        %1650 = vmatpush1.msra.mxu0 0.0
        %1651 = vmatprep.subr.mxu0 0.0
        %1652 = vmatpush1.msra.mxu0 0.0
        %1653 = vmatprep.subr.mxu0 0.0
        %1654 = vmatpush1.msra.mxu0 0.0
        %1655 = vmatprep.subr.mxu0 0.0
        %1656 = vmatpush1.msra.mxu0 0.0
        %1657 = vmatprep.subr.mxu0 0.0
        %1658 = vmatpush1.msra.mxu0 0.0
        %1659 = vmatprep.subr.mxu0 0.0
        %1660 = vmatpush1.msra.mxu0 0.0
        %1661 = vmatprep.subr.mxu0 0.0
        %1662 = vmatpush1.msra.mxu0 0.0
        %1663 = vmatprep.subr.mxu0 0.0
        %1664 = vmatpush1.msra.mxu0 0.0
        %1665 = vmatprep.subr.mxu0 0.0
        %1666 = vmatpush1.msra.mxu0 0.0
        %1667 = vmatprep.subr.mxu0 0.0
        %1668 = vmatpush1.msra.mxu0 0.0
        %1669 = vmatprep.mubr.f32.mxu0 0.0
        %v1670 = vand.u32 %v234, 4294901760
        %1671 = vmatmul.mubr.f32.gmra.mrb[0].mxu0 %v1670
        %v1672 = vpop.f32.mrb[0].mxu0
        %v1673 = vadd.f32 %v1348, %v1672
        %v1674 = vpop.f32.mrb[0].mxu0
        %1675 = vmatprep.mubr.f32.mxu0 0.0
        %v1676 = vand.u32 %v237, 4294901760
        %1677 = vmatmul.mubr.f32.gmra.mrb[0].mxu0 %v1676
        %v1678 = vpop.f32.mrb[0].mxu0
        %v1679 = vadd.f32 %v1356, %v1678
        %v1680 = vpop.f32.mrb[0].mxu0
        %1681 = vmatprep.mubr.f32.mxu0 0.0
        %v1682 = vand.u32 %v240, 4294901760
        %1683 = vmatmul.mubr.f32.gmra.mrb[0].mxu0 %v1682
        %v1684 = vpop.f32.mrb[0].mxu0
        %v1685 = vadd.f32 %v1364, %v1684
        %v1686 = vpop.f32.mrb[0].mxu0
        %1687 = vmatprep.mubr.f32.mxu0 0.0
        %v1688 = vand.u32 %v243, 4294901760
        %1689 = vmatmul.mubr.f32.gmra.mrb[0].mxu0 %v1688
        %v1690 = vpop.f32.mrb[0].mxu0
        %v1691 = vadd.f32 %v1372, %v1690
        %v1692 = vpop.f32.mrb[0].mxu0
        %1693 = vmatprep.mubr.f32.mxu0 0.0
        %v1694 = vand.u32 %v246, 4294901760
        %1695 = vmatmul.mubr.f32.gmra.mrb[0].mxu0 %v1694
        %v1696 = vpop.f32.mrb[0].mxu0
        %v1697 = vadd.f32 %v1380, %v1696
        %v1698 = vpop.f32.mrb[0].mxu0
        %1699 = vmatprep.mubr.f32.mxu0 0.0
        %v1700 = vand.u32 %v249, 4294901760
        %1701 = vmatmul.mubr.f32.gmra.mrb[0].mxu0 %v1700
        %v1702 = vpop.f32.mrb[0].mxu0
        %v1703 = vadd.f32 %v1388, %v1702
        %v1704 = vpop.f32.mrb[0].mxu0
        %1705 = vmatprep.mubr.f32.mxu0 0.0
        %v1706 = vand.u32 %v252, 4294901760
        %1707 = vmatmul.mubr.f32.gmra.mrb[0].mxu0 %v1706
        %v1708 = vpop.f32.mrb[0].mxu0
        %v1709 = vadd.f32 %v1396, %v1708
        %v1710 = vpop.f32.mrb[0].mxu0
        %1711 = vmatprep.mubr.f32.mxu0 0.0
        %v1712 = vand.u32 %v255, 4294901760
        %1713 = vmatmul.mubr.f32.gmra.mrb[0].mxu0 %v1712
        %v1714 = vpop.f32.mrb[0].mxu0
        %v1715 = vadd.f32 %v1404, %v1714
        %v1716 = vpop.f32.mrb[0].mxu0
        %1717 = vmatprep.mubr.f32.mxu0 0.0
        %v1718 = vand.u32 %v258, 4294901760
        %1719 = vmatmul.mubr.f32.gmra.mrb[0].mxu0 %v1718
        %v1720 = vpop.f32.mrb[0].mxu0
        %v1721 = vadd.f32 %v1412, %v1720
        %v1722 = vpop.f32.mrb[0].mxu0
        %1723 = vmatprep.mubr.f32.mxu0 0.0
        %v1724 = vand.u32 %v261, 4294901760
        %1725 = vmatmul.mubr.f32.gmra.mrb[0].mxu0 %v1724
        %v1726 = vpop.f32.mrb[0].mxu0
        %v1727 = vadd.f32 %v1420, %v1726
        %v1728 = vpop.f32.mrb[0].mxu0
        %1729 = vmatprep.mubr.f32.mxu0 0.0
        %v1730 = vand.u32 %v264, 4294901760
        %1731 = vmatmul.mubr.f32.gmra.mrb[0].mxu0 %v1730
        %v1732 = vpop.f32.mrb[0].mxu0
        %v1733 = vadd.f32 %v1428, %v1732
        %v1734 = vpop.f32.mrb[0].mxu0
        %1735 = vmatprep.mubr.f32.mxu0 0.0
        %v1736 = vand.u32 %v267, 4294901760
        %1737 = vmatmul.mubr.f32.gmra.mrb[0].mxu0 %v1736
        %v1738 = vpop.f32.mrb[0].mxu0
        %v1739 = vadd.f32 %v1436, %v1738
        %v1740 = vpop.f32.mrb[0].mxu0
        %1741 = vmatprep.mubr.f32.mxu0 0.0
        %v1742 = vand.u32 %v270, 4294901760
        %1743 = vmatmul.mubr.f32.gmra.mrb[0].mxu0 %v1742
        %v1744 = vpop.f32.mrb[0].mxu0
        %v1745 = vadd.f32 %v1444, %v1744
        %v1746 = vpop.f32.mrb[0].mxu0
        %1747 = vmatprep.mubr.f32.mxu0 0.0
        %v1748 = vand.u32 %v273, 4294901760
        %1749 = vmatmul.mubr.f32.gmra.mrb[0].mxu0 %v1748
        %v1750 = vpop.f32.mrb[0].mxu0
        %v1751 = vadd.f32 %v1452, %v1750
        %v1752 = vpop.f32.mrb[0].mxu0
        %1753 = vmatprep.mubr.f32.mxu0 0.0
        %v1754 = vand.u32 %v276, 4294901760
        %1755 = vmatmul.mubr.f32.gmra.mrb[0].mxu0 %v1754
        %v1756 = vpop.f32.mrb[0].mxu0
        %v1757 = vadd.f32 %v1460, %v1756
        %v1758 = vpop.f32.mrb[0].mxu0
        %1759 = vmatprep.mubr.f32.mxu0 0.0
        %v1760 = vand.u32 %v279, 4294901760
        %1761 = vmatmul.mubr.f32.gmra.mrb[0].mxu0 %v1760
        %v1762 = vpop.f32.mrb[0].mxu0
        %v1763 = vadd.f32 %v1468, %v1762
        %v1764 = vpop.f32.mrb[0].mxu0
        %1765 = vmatprep.mubr.f32.mxu0 0.0
        %v1766 = vand.u32 %v282, 4294901760
        %1767 = vmatmul.mubr.f32.gmra.mrb[0].mxu0 %v1766
        %v1768 = vpop.f32.mrb[0].mxu0
        %v1769 = vadd.f32 %v1476, %v1768
        %v1770 = vpop.f32.mrb[0].mxu0
        %1771 = vmatprep.mubr.f32.mxu0 0.0
        %v1772 = vand.u32 %v285, 4294901760
        %1773 = vmatmul.mubr.f32.gmra.mrb[0].mxu0 %v1772
        %v1774 = vpop.f32.mrb[0].mxu0
        %v1775 = vadd.f32 %v1484, %v1774
        %v1776 = vpop.f32.mrb[0].mxu0
        %1777 = vmatprep.mubr.f32.mxu0 0.0
        %v1778 = vand.u32 %v288, 4294901760
        %1779 = vmatmul.mubr.f32.gmra.mrb[0].mxu0 %v1778
        %v1780 = vpop.f32.mrb[0].mxu0
        %v1781 = vadd.f32 %v1492, %v1780
        %v1782 = vpop.f32.mrb[0].mxu0
        %1783 = vmatprep.mubr.f32.mxu0 0.0
        %v1784 = vand.u32 %v291, 4294901760
        %1785 = vmatmul.mubr.f32.gmra.mrb[0].mxu0 %v1784
        %v1786 = vpop.f32.mrb[0].mxu0
        %v1787 = vadd.f32 %v1500, %v1786
        %v1788 = vpop.f32.mrb[0].mxu0
        %1789 = vmatprep.mubr.f32.mxu0 0.0
        %v1790 = vand.u32 %v294, 4294901760
        %1791 = vmatmul.mubr.f32.gmra.mrb[0].mxu0 %v1790
        %v1792 = vpop.f32.mrb[0].mxu0
        %v1793 = vadd.f32 %v1508, %v1792
        %v1794 = vpop.f32.mrb[0].mxu0
        %1795 = vmatprep.mubr.f32.mxu0 0.0
        %v1796 = vand.u32 %v297, 4294901760
        %1797 = vmatmul.mubr.f32.gmra.mrb[0].mxu0 %v1796
        %v1798 = vpop.f32.mrb[0].mxu0
        %v1799 = vadd.f32 %v1516, %v1798
        %v1800 = vpop.f32.mrb[0].mxu0
        %1801 = vmatprep.mubr.f32.mxu0 0.0
        %v1802 = vand.u32 %v300, 4294901760
        %1803 = vmatmul.mubr.f32.gmra.mrb[0].mxu0 %v1802
        %v1804 = vpop.f32.mrb[0].mxu0
        %v1805 = vadd.f32 %v1524, %v1804
        %v1806 = vpop.f32.mrb[0].mxu0
        %1807 = vmatprep.mubr.f32.mxu0 0.0
        %v1808 = vand.u32 %v303, 4294901760
        %1809 = vmatmul.mubr.f32.gmra.mrb[0].mxu0 %v1808
        %v1810 = vpop.f32.mrb[0].mxu0
        %v1811 = vadd.f32 %v1532, %v1810
        %v1812 = vpop.f32.mrb[0].mxu0
        %1813 = vmatprep.mubr.f32.mxu0 0.0
        %v1814 = vand.u32 %v306, 4294901760
        %1815 = vmatmul.mubr.f32.gmra.mrb[0].mxu0 %v1814
        %v1816 = vpop.f32.mrb[0].mxu0
        %v1817 = vadd.f32 %v1540, %v1816
        %v1818 = vpop.f32.mrb[0].mxu0
        %1819 = vmatprep.mubr.f32.mxu0 0.0
        %v1820 = vand.u32 %v309, 4294901760
        %1821 = vmatmul.mubr.f32.gmra.mrb[0].mxu0 %v1820
        %v1822 = vpop.f32.mrb[0].mxu0
        %v1823 = vadd.f32 %v1548, %v1822
        %v1824 = vpop.f32.mrb[0].mxu0
        %1825 = vmatprep.mubr.f32.mxu0 0.0
        %v1826 = vand.u32 %v312, 4294901760
        %1827 = vmatmul.mubr.f32.gmra.mrb[0].mxu0 %v1826
        %v1828 = vpop.f32.mrb[0].mxu0
        %v1829 = vadd.f32 %v1556, %v1828
        %v1830 = vpop.f32.mrb[0].mxu0
        %1831 = vmatprep.mubr.f32.mxu0 0.0
        %v1832 = vand.u32 %v315, 4294901760
        %1833 = vmatmul.mubr.f32.gmra.mrb[0].mxu0 %v1832
        %v1834 = vpop.f32.mrb[0].mxu0
        %v1835 = vadd.f32 %v1564, %v1834
        %v1836 = vpop.f32.mrb[0].mxu0
        %1837 = vmatprep.mubr.f32.mxu0 0.0
        %v1838 = vand.u32 %v318, 4294901760
        %1839 = vmatmul.mubr.f32.gmra.mrb[0].mxu0 %v1838
        %v1840 = vpop.f32.mrb[0].mxu0
        %v1841 = vadd.f32 %v1572, %v1840
        %v1842 = vpop.f32.mrb[0].mxu0
        %1843 = vmatprep.mubr.f32.mxu0 0.0
        %v1844 = vand.u32 %v321, 4294901760
        %1845 = vmatmul.mubr.f32.gmra.mrb[0].mxu0 %v1844
        %v1846 = vpop.f32.mrb[0].mxu0
        %v1847 = vadd.f32 %v1580, %v1846
        %v1848 = vpop.f32.mrb[0].mxu0
        %1849 = vmatprep.mubr.f32.mxu0 0.0
        %v1850 = vand.u32 %v324, 4294901760
        %1851 = vmatmul.mubr.f32.gmra.mrb[0].mxu0 %v1850
        %v1852 = vpop.f32.mrb[0].mxu0
        %v1853 = vadd.f32 %v1588, %v1852
        %v1854 = vpop.f32.mrb[0].mxu0
        %1855 = vmatprep.mubr.f32.mxu0 0.0
        %v1856 = vand.u32 %v327, 4294901760
        %1857 = vmatmul.mubr.f32.gmra.mrb[0].mxu0 %v1856
        %v1858 = vpop.f32.mrb[0].mxu0
        %v1859 = vadd.f32 %v1596, %v1858
        %v1860 = vpop.f32.mrb[0].mxu0
        %1861 = vdwg.mxu0
        %1862 = vmatprep.subr.mxu0 0.0
        %v1863 = vand.u32 %v230, 4294901760
        %1864 = vmatpush1.msra.mxu0 %v1863
        %1865 = vmatprep.subr.mxu0 0.0
        %v1866 = vand.u32 %v231, 4294901760
        %1867 = vmatpush1.msra.mxu0 %v1866
        %1868 = vmatprep.subr.mxu0 0.0
        %1869 = vmatpush1.msra.mxu0 0.0
        %1870 = vmatprep.subr.mxu0 0.0
        %1871 = vmatpush1.msra.mxu0 0.0
        %1872 = vmatprep.subr.mxu0 0.0
        %1873 = vmatpush1.msra.mxu0 0.0
        %1874 = vmatprep.subr.mxu0 0.0
        %1875 = vmatpush1.msra.mxu0 0.0
        %1876 = vmatprep.subr.mxu0 0.0
        %1877 = vmatpush1.msra.mxu0 0.0
        %1878 = vmatprep.subr.mxu0 0.0
        %1879 = vmatpush1.msra.mxu0 0.0
        %1880 = vmatprep.subr.mxu0 0.0
        %1881 = vmatpush1.msra.mxu0 0.0
        %1882 = vmatprep.subr.mxu0 0.0
        %1883 = vmatpush1.msra.mxu0 0.0
        %1884 = vmatprep.subr.mxu0 0.0
        %1885 = vmatpush1.msra.mxu0 0.0
        %1886 = vmatprep.subr.mxu0 0.0
        %1887 = vmatpush1.msra.mxu0 0.0
        %1888 = vmatprep.subr.mxu0 0.0
        %1889 = vmatpush1.msra.mxu0 0.0
        %1890 = vmatprep.subr.mxu0 0.0
        %1891 = vmatpush1.msra.mxu0 0.0
        %1892 = vmatprep.subr.mxu0 0.0
        %1893 = vmatpush1.msra.mxu0 0.0
        %1894 = vmatprep.subr.mxu0 0.0
        %1895 = vmatpush1.msra.mxu0 0.0
        %1896 = vmatprep.subr.mxu0 0.0
        %1897 = vmatpush1.msra.mxu0 0.0
        %1898 = vmatprep.subr.mxu0 0.0
        %1899 = vmatpush1.msra.mxu0 0.0
        %1900 = vmatprep.subr.mxu0 0.0
        %1901 = vmatpush1.msra.mxu0 0.0
        %1902 = vmatprep.subr.mxu0 0.0
        %1903 = vmatpush1.msra.mxu0 0.0
        %1904 = vmatprep.subr.mxu0 0.0
        %1905 = vmatpush1.msra.mxu0 0.0
        %1906 = vmatprep.subr.mxu0 0.0
        %1907 = vmatpush1.msra.mxu0 0.0
        %1908 = vmatprep.subr.mxu0 0.0
        %1909 = vmatpush1.msra.mxu0 0.0
        %1910 = vmatprep.subr.mxu0 0.0
        %1911 = vmatpush1.msra.mxu0 0.0
        %1912 = vmatprep.subr.mxu0 0.0
        %1913 = vmatpush1.msra.mxu0 0.0
        %1914 = vmatprep.subr.mxu0 0.0
        %1915 = vmatpush1.msra.mxu0 0.0
        %1916 = vmatprep.subr.mxu0 0.0
        %1917 = vmatpush1.msra.mxu0 0.0
        %1918 = vmatprep.subr.mxu0 0.0
        %1919 = vmatpush1.msra.mxu0 0.0
        %1920 = vmatprep.subr.mxu0 0.0
        %1921 = vmatpush1.msra.mxu0 0.0
        %1922 = vmatprep.subr.mxu0 0.0
        %1923 = vmatpush1.msra.mxu0 0.0
        %1924 = vmatprep.subr.mxu0 0.0
        %1925 = vmatpush1.msra.mxu0 0.0
        %1926 = vmatprep.subr.mxu0 0.0
        %1927 = vmatpush1.msra.mxu0 0.0
        %1928 = vmatprep.mubr.f32.mxu0 0.0
        %v1929 = vand.u32 %v234, 4294901760
        %1930 = vmatmul.mubr.f32.gmra.mrb[0].mxu0 %v1929
        %v1931 = vpop.f32.mrb[0].mxu0
        %v1932 = vadd.f32 %v1673, %v1931
        %v1933 = vpop.f32.mrb[0].mxu0
        %1934 = vmatprep.mubr.f32.mxu0 0.0
        %v1935 = vand.u32 %v237, 4294901760
        %1936 = vmatmul.mubr.f32.gmra.mrb[0].mxu0 %v1935
        %v1937 = vpop.f32.mrb[0].mxu0
        %v1938 = vadd.f32 %v1679, %v1937
        %v1939 = vpop.f32.mrb[0].mxu0
        %1940 = vmatprep.mubr.f32.mxu0 0.0
        %v1941 = vand.u32 %v240, 4294901760
        %1942 = vmatmul.mubr.f32.gmra.mrb[0].mxu0 %v1941
        %v1943 = vpop.f32.mrb[0].mxu0
        %v1944 = vadd.f32 %v1685, %v1943
        %v1945 = vpop.f32.mrb[0].mxu0
        %1946 = vmatprep.mubr.f32.mxu0 0.0
        %v1947 = vand.u32 %v243, 4294901760
        %1948 = vmatmul.mubr.f32.gmra.mrb[0].mxu0 %v1947
        %v1949 = vpop.f32.mrb[0].mxu0
        %v1950 = vadd.f32 %v1691, %v1949
        %v1951 = vpop.f32.mrb[0].mxu0
        %1952 = vmatprep.mubr.f32.mxu0 0.0
        %v1953 = vand.u32 %v246, 4294901760
        %1954 = vmatmul.mubr.f32.gmra.mrb[0].mxu0 %v1953
        %v1955 = vpop.f32.mrb[0].mxu0
        %v1956 = vadd.f32 %v1697, %v1955
        %v1957 = vpop.f32.mrb[0].mxu0
        %1958 = vmatprep.mubr.f32.mxu0 0.0
        %v1959 = vand.u32 %v249, 4294901760
        %1960 = vmatmul.mubr.f32.gmra.mrb[0].mxu0 %v1959
        %v1961 = vpop.f32.mrb[0].mxu0
        %v1962 = vadd.f32 %v1703, %v1961
        %v1963 = vpop.f32.mrb[0].mxu0
        %1964 = vmatprep.mubr.f32.mxu0 0.0
        %v1965 = vand.u32 %v252, 4294901760
        %1966 = vmatmul.mubr.f32.gmra.mrb[0].mxu0 %v1965
        %v1967 = vpop.f32.mrb[0].mxu0
        %v1968 = vadd.f32 %v1709, %v1967
        %v1969 = vpop.f32.mrb[0].mxu0
        %1970 = vmatprep.mubr.f32.mxu0 0.0
        %v1971 = vand.u32 %v255, 4294901760
        %1972 = vmatmul.mubr.f32.gmra.mrb[0].mxu0 %v1971
        %v1973 = vpop.f32.mrb[0].mxu0
        %v1974 = vadd.f32 %v1715, %v1973
        %v1975 = vpop.f32.mrb[0].mxu0
        %1976 = vmatprep.mubr.f32.mxu0 0.0
        %v1977 = vand.u32 %v258, 4294901760
        %1978 = vmatmul.mubr.f32.gmra.mrb[0].mxu0 %v1977
        %v1979 = vpop.f32.mrb[0].mxu0
        %v1980 = vadd.f32 %v1721, %v1979
        %v1981 = vpop.f32.mrb[0].mxu0
        %1982 = vmatprep.mubr.f32.mxu0 0.0
        %v1983 = vand.u32 %v261, 4294901760
        %1984 = vmatmul.mubr.f32.gmra.mrb[0].mxu0 %v1983
        %v1985 = vpop.f32.mrb[0].mxu0
        %v1986 = vadd.f32 %v1727, %v1985
        %v1987 = vpop.f32.mrb[0].mxu0
        %1988 = vmatprep.mubr.f32.mxu0 0.0
        %v1989 = vand.u32 %v264, 4294901760
        %1990 = vmatmul.mubr.f32.gmra.mrb[0].mxu0 %v1989
        %v1991 = vpop.f32.mrb[0].mxu0
        %v1992 = vadd.f32 %v1733, %v1991
        %v1993 = vpop.f32.mrb[0].mxu0
        %1994 = vmatprep.mubr.f32.mxu0 0.0
        %v1995 = vand.u32 %v267, 4294901760
        %1996 = vmatmul.mubr.f32.gmra.mrb[0].mxu0 %v1995
        %v1997 = vpop.f32.mrb[0].mxu0
        %v1998 = vadd.f32 %v1739, %v1997
        %v1999 = vpop.f32.mrb[0].mxu0
        %2000 = vmatprep.mubr.f32.mxu0 0.0
        %v2001 = vand.u32 %v270, 4294901760
        %2002 = vmatmul.mubr.f32.gmra.mrb[0].mxu0 %v2001
        %v2003 = vpop.f32.mrb[0].mxu0
        %v2004 = vadd.f32 %v1745, %v2003
        %v2005 = vpop.f32.mrb[0].mxu0
        %2006 = vmatprep.mubr.f32.mxu0 0.0
        %v2007 = vand.u32 %v273, 4294901760
        %2008 = vmatmul.mubr.f32.gmra.mrb[0].mxu0 %v2007
        %v2009 = vpop.f32.mrb[0].mxu0
        %v2010 = vadd.f32 %v1751, %v2009
        %v2011 = vpop.f32.mrb[0].mxu0
        %2012 = vmatprep.mubr.f32.mxu0 0.0
        %v2013 = vand.u32 %v276, 4294901760
        %2014 = vmatmul.mubr.f32.gmra.mrb[0].mxu0 %v2013
        %v2015 = vpop.f32.mrb[0].mxu0
        %v2016 = vadd.f32 %v1757, %v2015
        %v2017 = vpop.f32.mrb[0].mxu0
        %2018 = vmatprep.mubr.f32.mxu0 0.0
        %v2019 = vand.u32 %v279, 4294901760
        %2020 = vmatmul.mubr.f32.gmra.mrb[0].mxu0 %v2019
        %v2021 = vpop.f32.mrb[0].mxu0
        %v2022 = vadd.f32 %v1763, %v2021
        %v2023 = vpop.f32.mrb[0].mxu0
        %2024 = vmatprep.mubr.f32.mxu0 0.0
        %v2025 = vand.u32 %v282, 4294901760
        %2026 = vmatmul.mubr.f32.gmra.mrb[0].mxu0 %v2025
        %v2027 = vpop.f32.mrb[0].mxu0
        %v2028 = vadd.f32 %v1769, %v2027
        %v2029 = vpop.f32.mrb[0].mxu0
        %2030 = vmatprep.mubr.f32.mxu0 0.0
        %v2031 = vand.u32 %v285, 4294901760
        %2032 = vmatmul.mubr.f32.gmra.mrb[0].mxu0 %v2031
        %v2033 = vpop.f32.mrb[0].mxu0
        %v2034 = vadd.f32 %v1775, %v2033
        %v2035 = vpop.f32.mrb[0].mxu0
        %2036 = vmatprep.mubr.f32.mxu0 0.0
        %v2037 = vand.u32 %v288, 4294901760
        %2038 = vmatmul.mubr.f32.gmra.mrb[0].mxu0 %v2037
        %v2039 = vpop.f32.mrb[0].mxu0
        %v2040 = vadd.f32 %v1781, %v2039
        %v2041 = vpop.f32.mrb[0].mxu0
        %2042 = vmatprep.mubr.f32.mxu0 0.0
        %v2043 = vand.u32 %v291, 4294901760
        %2044 = vmatmul.mubr.f32.gmra.mrb[0].mxu0 %v2043
        %v2045 = vpop.f32.mrb[0].mxu0
        %v2046 = vadd.f32 %v1787, %v2045
        %v2047 = vpop.f32.mrb[0].mxu0
        %2048 = vmatprep.mubr.f32.mxu0 0.0
        %v2049 = vand.u32 %v294, 4294901760
        %2050 = vmatmul.mubr.f32.gmra.mrb[0].mxu0 %v2049
        %v2051 = vpop.f32.mrb[0].mxu0
        %v2052 = vadd.f32 %v1793, %v2051
        %v2053 = vpop.f32.mrb[0].mxu0
        %2054 = vmatprep.mubr.f32.mxu0 0.0
        %v2055 = vand.u32 %v297, 4294901760
        %2056 = vmatmul.mubr.f32.gmra.mrb[0].mxu0 %v2055
        %v2057 = vpop.f32.mrb[0].mxu0
        %v2058 = vadd.f32 %v1799, %v2057
        %v2059 = vpop.f32.mrb[0].mxu0
        %2060 = vmatprep.mubr.f32.mxu0 0.0
        %v2061 = vand.u32 %v300, 4294901760
        %2062 = vmatmul.mubr.f32.gmra.mrb[0].mxu0 %v2061
        %v2063 = vpop.f32.mrb[0].mxu0
        %v2064 = vadd.f32 %v1805, %v2063
        %v2065 = vpop.f32.mrb[0].mxu0
        %2066 = vmatprep.mubr.f32.mxu0 0.0
        %v2067 = vand.u32 %v303, 4294901760
        %2068 = vmatmul.mubr.f32.gmra.mrb[0].mxu0 %v2067
        %v2069 = vpop.f32.mrb[0].mxu0
        %v2070 = vadd.f32 %v1811, %v2069
        %v2071 = vpop.f32.mrb[0].mxu0
        %2072 = vmatprep.mubr.f32.mxu0 0.0
        %v2073 = vand.u32 %v306, 4294901760
        %2074 = vmatmul.mubr.f32.gmra.mrb[0].mxu0 %v2073
        %v2075 = vpop.f32.mrb[0].mxu0
        %v2076 = vadd.f32 %v1817, %v2075
        %v2077 = vpop.f32.mrb[0].mxu0
        %2078 = vmatprep.mubr.f32.mxu0 0.0
        %v2079 = vand.u32 %v309, 4294901760
        %2080 = vmatmul.mubr.f32.gmra.mrb[0].mxu0 %v2079
        %v2081 = vpop.f32.mrb[0].mxu0
        %v2082 = vadd.f32 %v1823, %v2081
        %v2083 = vpop.f32.mrb[0].mxu0
        %2084 = vmatprep.mubr.f32.mxu0 0.0
        %v2085 = vand.u32 %v312, 4294901760
        %2086 = vmatmul.mubr.f32.gmra.mrb[0].mxu0 %v2085
        %v2087 = vpop.f32.mrb[0].mxu0
        %v2088 = vadd.f32 %v1829, %v2087
        %v2089 = vpop.f32.mrb[0].mxu0
        %2090 = vmatprep.mubr.f32.mxu0 0.0
        %v2091 = vand.u32 %v315, 4294901760
        %2092 = vmatmul.mubr.f32.gmra.mrb[0].mxu0 %v2091
        %v2093 = vpop.f32.mrb[0].mxu0
        %v2094 = vadd.f32 %v1835, %v2093
        %v2095 = vpop.f32.mrb[0].mxu0
        %2096 = vmatprep.mubr.f32.mxu0 0.0
        %v2097 = vand.u32 %v318, 4294901760
        %2098 = vmatmul.mubr.f32.gmra.mrb[0].mxu0 %v2097
        %v2099 = vpop.f32.mrb[0].mxu0
        %v2100 = vadd.f32 %v1841, %v2099
        %v2101 = vpop.f32.mrb[0].mxu0
        %2102 = vmatprep.mubr.f32.mxu0 0.0
        %v2103 = vand.u32 %v321, 4294901760
        %2104 = vmatmul.mubr.f32.gmra.mrb[0].mxu0 %v2103
        %v2105 = vpop.f32.mrb[0].mxu0
        %v2106 = vadd.f32 %v1847, %v2105
        %v2107 = vpop.f32.mrb[0].mxu0
        %2108 = vmatprep.mubr.f32.mxu0 0.0
        %v2109 = vand.u32 %v324, 4294901760
        %2110 = vmatmul.mubr.f32.gmra.mrb[0].mxu0 %v2109
        %v2111 = vpop.f32.mrb[0].mxu0
        %v2112 = vadd.f32 %v1853, %v2111
        %v2113 = vpop.f32.mrb[0].mxu0
        %2114 = vmatprep.mubr.f32.mxu0 0.0
        %v2115 = vand.u32 %v327, 4294901760
        %2116 = vmatmul.mubr.f32.gmra.mrb[0].mxu0 %v2115
        %v2117 = vpop.f32.mrb[0].mxu0
        %v2118 = vadd.f32 %v1859, %v2117
        %v2119 = vpop.f32.mrb[0].mxu0
        %2120 = vdwg.mxu0
        %vm2121 = vcmask 31744
        %2122 = vst.msk [vmem:[%s196] sm:$0xff] %vm2121, %v1932
        %2123 = vst.msk [vmem:[%s196 + $0x8] sm:$0xff] %vm2121, %v1938
        %2124 = vst.msk [vmem:[%s196 + $0x10] sm:$0xff] %vm2121, %v1944
        %2125 = vst.msk [vmem:[%s196 + $0x18] sm:$0xff] %vm2121, %v1950
        %2126 = vst.msk [vmem:[%s196 + $0x20] sm:$0xff] %vm2121, %v1956
        %2127 = vst.msk [vmem:[%s196 + $0x28] sm:$0xff] %vm2121, %v1962
        %2128 = vst.msk [vmem:[%s196 + $0x30] sm:$0xff] %vm2121, %v1968
        %2129 = vst.msk [vmem:[%s196 + $0x38] sm:$0xff] %vm2121, %v1974
        %2130 = vst.msk [vmem:[%s196 + $0x40] sm:$0xff] %vm2121, %v1980
        %2131 = vst.msk [vmem:[%s196 + $0x48] sm:$0xff] %vm2121, %v1986
        %2132 = vst.msk [vmem:[%s196 + $0x50] sm:$0xff] %vm2121, %v1992
        %2133 = vst.msk [vmem:[%s196 + $0x58] sm:$0xff] %vm2121, %v1998
        %2134 = vst.msk [vmem:[%s196 + $0x60] sm:$0xff] %vm2121, %v2004
        %2135 = vst.msk [vmem:[%s196 + $0x68] sm:$0xff] %vm2121, %v2010
        %2136 = vst.msk [vmem:[%s196 + $0x70] sm:$0xff] %vm2121, %v2016
        %2137 = vst.msk [vmem:[%s196 + $0x78] sm:$0xff] %vm2121, %v2022
        %2138 = vst.msk [vmem:[%s196 + $0x80] sm:$0xff] %vm2121, %v2028
        %2139 = vst.msk [vmem:[%s196 + $0x88] sm:$0xff] %vm2121, %v2034
        %2140 = vst.msk [vmem:[%s196 + $0x90] sm:$0xff] %vm2121, %v2040
        %2141 = vst.msk [vmem:[%s196 + $0x98] sm:$0xff] %vm2121, %v2046
        %2142 = vst.msk [vmem:[%s196 + $0xa0] sm:$0xff] %vm2121, %v2052
        %2143 = vst.msk [vmem:[%s196 + $0xa8] sm:$0xff] %vm2121, %v2058
        %2144 = vst.msk [vmem:[%s196 + $0xb0] sm:$0xff] %vm2121, %v2064
        %2145 = vst.msk [vmem:[%s196 + $0xb8] sm:$0xff] %vm2121, %v2070
        %2146 = vst.msk [vmem:[%s196 + $0xc0] sm:$0xff] %vm2121, %v2076
        %2147 = vst.msk [vmem:[%s196 + $0xc8] sm:$0xff] %vm2121, %v2082
        %2148 = vst.msk [vmem:[%s196 + $0xd0] sm:$0xff] %vm2121, %v2088
        %2149 = vst.msk [vmem:[%s196 + $0xd8] sm:$0xff] %vm2121, %v2094
        %2150 = vst.msk [vmem:[%s196 + $0xe0] sm:$0xff] %vm2121, %v2100
        %2151 = vst.msk [vmem:[%s196 + $0xe8] sm:$0xff] %vm2121, %v2106
        %2152 = vst.msk [vmem:[%s196 + $0xf0] sm:$0xff] %vm2121, %v2112
        %2153 = vst.msk [vmem:[%s196 + $0xf8] sm:$0xff] %vm2121, %v2118
        %v2154 = vsel %vm2121, %v1932, 0.0
        %v2155 = vsel %vm2121, %v1938, 0.0
        %v2156 = vadd.f32 %v2154, %v2155
        %v2157 = vsel %vm2121, %v1944, 0.0
        %v2158 = vadd.f32 %v2156, %v2157
        %v2159 = vsel %vm2121, %v1950, 0.0
        %v2160 = vadd.f32 %v2158, %v2159
        %v2161 = vsel %vm2121, %v1956, 0.0
        %v2162 = vadd.f32 %v2160, %v2161
        %v2163 = vsel %vm2121, %v1962, 0.0
        %v2164 = vadd.f32 %v2162, %v2163
        %v2165 = vsel %vm2121, %v1968, 0.0
        %v2166 = vadd.f32 %v2164, %v2165
        %v2167 = vsel %vm2121, %v1974, 0.0
        %v2168 = vadd.f32 %v2166, %v2167
        %v2169 = vsel %vm2121, %v1980, 0.0
        %v2170 = vadd.f32 %v2168, %v2169
        %v2171 = vsel %vm2121, %v1986, 0.0
        %v2172 = vadd.f32 %v2170, %v2171
        %v2173 = vsel %vm2121, %v1992, 0.0
        %v2174 = vadd.f32 %v2172, %v2173
        %v2175 = vsel %vm2121, %v1998, 0.0
        %v2176 = vadd.f32 %v2174, %v2175
        %v2177 = vsel %vm2121, %v2004, 0.0
        %v2178 = vadd.f32 %v2176, %v2177
        %v2179 = vsel %vm2121, %v2010, 0.0
        %v2180 = vadd.f32 %v2178, %v2179
        %v2181 = vsel %vm2121, %v2016, 0.0
        %v2182 = vadd.f32 %v2180, %v2181
        %v2183 = vsel %vm2121, %v2022, 0.0
        %v2184 = vadd.f32 %v2182, %v2183
        %v2185 = vsel %vm2121, %v2028, 0.0
        %v2186 = vadd.f32 %v2184, %v2185
        %v2187 = vsel %vm2121, %v2034, 0.0
        %v2188 = vadd.f32 %v2186, %v2187
        %v2189 = vsel %vm2121, %v2040, 0.0
        %v2190 = vadd.f32 %v2188, %v2189
        %v2191 = vsel %vm2121, %v2046, 0.0
        %v2192 = vadd.f32 %v2190, %v2191
        %v2193 = vsel %vm2121, %v2052, 0.0
        %v2194 = vadd.f32 %v2192, %v2193
        %v2195 = vsel %vm2121, %v2058, 0.0
        %v2196 = vadd.f32 %v2194, %v2195
        %v2197 = vsel %vm2121, %v2064, 0.0
        %v2198 = vadd.f32 %v2196, %v2197
        %v2199 = vsel %vm2121, %v2070, 0.0
        %v2200 = vadd.f32 %v2198, %v2199
        %v2201 = vsel %vm2121, %v2076, 0.0
        %v2202 = vadd.f32 %v2200, %v2201
        %v2203 = vsel %vm2121, %v2082, 0.0
        %v2204 = vadd.f32 %v2202, %v2203
        %v2205 = vsel %vm2121, %v2088, 0.0
        %v2206 = vadd.f32 %v2204, %v2205
        %v2207 = vsel %vm2121, %v2094, 0.0
        %v2208 = vadd.f32 %v2206, %v2207
        %v2209 = vsel %vm2121, %v2100, 0.0
        %v2210 = vadd.f32 %v2208, %v2209
        %v2211 = vsel %vm2121, %v2106, 0.0
        %v2212 = vadd.f32 %v2210, %v2211
        %v2213 = vsel %vm2121, %v2112, 0.0
        %v2214 = vadd.f32 %v2212, %v2213
        %v2215 = vsel %vm2121, %v2118, 0.0
        %v2216 = vadd.f32 %v2214, %v2215
        %v2217 = vrot.slane %v2216, 4
        %v2218 = vadd.f32 %v2216, %v2217
        %v2219 = vrot.slane %v2218, 2
        %v2220 = vadd.f32 %v2218, %v2219
        %v2221 = vrot.slane %v2220, 1
        %v2222 = vadd.f32 %v2220, %v2221
        %v2223 = vmul.f32 %v1932, %v1932
        %v2224 = vmul.f32 %v1938, %v1938
        %v2225 = vmul.f32 %v1944, %v1944
        %v2226 = vmul.f32 %v1950, %v1950
        %v2227 = vmul.f32 %v1956, %v1956
        %v2228 = vmul.f32 %v1962, %v1962
        %v2229 = vmul.f32 %v1968, %v1968
        %v2230 = vmul.f32 %v1974, %v1974
        %v2231 = vmul.f32 %v1980, %v1980
        %v2232 = vmul.f32 %v1986, %v1986
        %v2233 = vmul.f32 %v1992, %v1992
        %v2234 = vmul.f32 %v1998, %v1998
        %v2235 = vmul.f32 %v2004, %v2004
        %v2236 = vmul.f32 %v2010, %v2010
        %v2237 = vmul.f32 %v2016, %v2016
        %v2238 = vmul.f32 %v2022, %v2022
        %v2239 = vmul.f32 %v2028, %v2028
        %v2240 = vmul.f32 %v2034, %v2034
        %v2241 = vmul.f32 %v2040, %v2040
        %v2242 = vmul.f32 %v2046, %v2046
        %v2243 = vmul.f32 %v2052, %v2052
        %v2244 = vmul.f32 %v2058, %v2058
        %v2245 = vmul.f32 %v2064, %v2064
        %v2246 = vmul.f32 %v2070, %v2070
        %v2247 = vmul.f32 %v2076, %v2076
        %v2248 = vmul.f32 %v2082, %v2082
        %v2249 = vmul.f32 %v2088, %v2088
        %v2250 = vmul.f32 %v2094, %v2094
        %v2251 = vmul.f32 %v2100, %v2100
        %v2252 = vmul.f32 %v2106, %v2106
        %v2253 = vmul.f32 %v2112, %v2112
        %v2254 = vmul.f32 %v2118, %v2118
        %v2255 = vsel %vm2121, %v2223, 0.0
        %v2256 = vsel %vm2121, %v2224, 0.0
        %v2257 = vadd.f32 %v2255, %v2256
        %v2258 = vsel %vm2121, %v2225, 0.0
        %v2259 = vadd.f32 %v2257, %v2258
        %v2260 = vsel %vm2121, %v2226, 0.0
        %v2261 = vadd.f32 %v2259, %v2260
        %v2262 = vsel %vm2121, %v2227, 0.0
        %v2263 = vadd.f32 %v2261, %v2262
        %v2264 = vsel %vm2121, %v2228, 0.0
        %v2265 = vadd.f32 %v2263, %v2264
        %v2266 = vsel %vm2121, %v2229, 0.0
        %v2267 = vadd.f32 %v2265, %v2266
        %v2268 = vsel %vm2121, %v2230, 0.0
        %v2269 = vadd.f32 %v2267, %v2268
        %v2270 = vsel %vm2121, %v2231, 0.0
        %v2271 = vadd.f32 %v2269, %v2270
        %v2272 = vsel %vm2121, %v2232, 0.0
        %v2273 = vadd.f32 %v2271, %v2272
        %v2274 = vsel %vm2121, %v2233, 0.0
        %v2275 = vadd.f32 %v2273, %v2274
        %v2276 = vsel %vm2121, %v2234, 0.0
        %v2277 = vadd.f32 %v2275, %v2276
        %v2278 = vsel %vm2121, %v2235, 0.0
        %v2279 = vadd.f32 %v2277, %v2278
        %v2280 = vsel %vm2121, %v2236, 0.0
        %v2281 = vadd.f32 %v2279, %v2280
        %v2282 = vsel %vm2121, %v2237, 0.0
        %v2283 = vadd.f32 %v2281, %v2282
        %v2284 = vsel %vm2121, %v2238, 0.0
        %v2285 = vadd.f32 %v2283, %v2284
        %v2286 = vsel %vm2121, %v2239, 0.0
        %v2287 = vadd.f32 %v2285, %v2286
        %v2288 = vsel %vm2121, %v2240, 0.0
        %v2289 = vadd.f32 %v2287, %v2288
        %v2290 = vsel %vm2121, %v2241, 0.0
        %v2291 = vadd.f32 %v2289, %v2290
        %v2292 = vsel %vm2121, %v2242, 0.0
        %v2293 = vadd.f32 %v2291, %v2292
        %v2294 = vsel %vm2121, %v2243, 0.0
        %v2295 = vadd.f32 %v2293, %v2294
        %v2296 = vsel %vm2121, %v2244, 0.0
        %v2297 = vadd.f32 %v2295, %v2296
        %v2298 = vsel %vm2121, %v2245, 0.0
        %v2299 = vadd.f32 %v2297, %v2298
        %v2300 = vsel %vm2121, %v2246, 0.0
        %v2301 = vadd.f32 %v2299, %v2300
        %v2302 = vsel %vm2121, %v2247, 0.0
        %v2303 = vadd.f32 %v2301, %v2302
        %v2304 = vsel %vm2121, %v2248, 0.0
        %v2305 = vadd.f32 %v2303, %v2304
        %v2306 = vsel %vm2121, %v2249, 0.0
        %v2307 = vadd.f32 %v2305, %v2306
        %v2308 = vsel %vm2121, %v2250, 0.0
        %v2309 = vadd.f32 %v2307, %v2308
        %v2310 = vsel %vm2121, %v2251, 0.0
        %v2311 = vadd.f32 %v2309, %v2310
        %v2312 = vsel %vm2121, %v2252, 0.0
        %v2313 = vadd.f32 %v2311, %v2312
        %v2314 = vsel %vm2121, %v2253, 0.0
        %v2315 = vadd.f32 %v2313, %v2314
        %v2316 = vsel %vm2121, %v2254, 0.0
        %v2317 = vadd.f32 %v2315, %v2316
        %v2318 = vrot.slane %v2317, 4
        %v2319 = vadd.f32 %v2317, %v2318
        %v2320 = vrot.slane %v2319, 2
        %v2321 = vadd.f32 %v2319, %v2320
        %v2322 = vrot.slane %v2321, 1
        %v2323 = vadd.f32 %v2321, %v2322
        %p2324 = scmp.eq.s32.totalorder %s18, 0
        // Predicated region
        $region29: #{tpu_custom_call.1} parent=27 // pred_check
          %p2325 = pneg %p2324
        $region30: #{tpu_custom_call.1} parent=27 // pred_check_branch
          %2327 = sbr.rel (%p2325) target = $region32
        $region31: #{tpu_custom_call.1} parent=27 // pred_region
          %vm2328 = vcmask 24576
          %2329 = vst.msk [vmem:[#allocation2] sm:$0x1] %vm2328, %v2222
          %2330 = vst.msk [vmem:[#allocation4] sm:$0x1] %vm2328, %v2323
        $region32: #{tpu_custom_call.1} parent=27 // pred_fallthru
          _
        %p2331 = scmp.ne.s32.totalorder %s18, 0
        // Predicated region
        $region33: #{tpu_custom_call.1} parent=27 // pred_check
          %p2332 = pneg %p2331
        $region34: #{tpu_custom_call.1} parent=27 // pred_check_branch
          %2334 = sbr.rel (%p2332) target = $region36
        $region35: #{tpu_custom_call.1} parent=27 // pred_region
          %v2335 = vld [vmem:[#allocation2] sm:$0x1]
          %v2336 = vadd.f32 %v2335, %v2222
          %vm2337 = vcmask 24576
          %2338 = vst.msk [vmem:[#allocation2] sm:$0x1] %vm2337, %v2336
          %v2339 = vld [vmem:[#allocation4] sm:$0x1]
          %v2340 = vadd.f32 %v2339, %v2323
          %2341 = vst.msk [vmem:[#allocation4] sm:$0x1] %vm2337, %v2340
        $region36: #{tpu_custom_call.1} parent=27 // pred_fallthru
          _
        %s2342 = smul.u32 32, %s18
        %p2343 = scmp.lt.s32.totalorder %s2342, 63
        %s2344 = scalar_select %p2343, %s2342, 63
        %s2345 = smul.addr %s2344, 8
        %s2346 = scalar_lea.vmem %s2, %s2345
        // Predicated region
        $region37: #{tpu_custom_call.1} parent=27 // pred_check
          %p2347 = pneg %p83
        $region38: #{tpu_custom_call.1} parent=27 // pred_check_branch
          %2349 = sbr.rel (%p2347) target = $region40
        $region39: #{tpu_custom_call.1} parent=27 // pred_region
          %s2350 = smul.u32 32, %s18
        $region40: #{tpu_custom_call.1} parent=27 // pred_fallthru
          _
        // Predicated region
        $region41: #{tpu_custom_call.1} parent=27 // pred_check
          %p2351 = pneg %p104
        $region42: #{tpu_custom_call.1} parent=27 // pred_check_branch
          %2353 = sbr.rel (%p2351) target = $region44
        $region43: #{tpu_custom_call.1} parent=27 // pred_region
          %s2355 = ssub.s32 16, 16
          %2356 = vsyncadd [#allocation3], %s2355
          %s2358 = sshll.u32 [#allocation2], 4
          %s2359 = int_to_ptr.vmem [resolvable:$true] %s2358
          %2361 = dma.vmem_to_hbm [thread:$0]  %s2359, 16, %s3, [#allocation3]
        $region44: #{tpu_custom_call.1} parent=27 // pred_fallthru
          _
        // Predicated region
        $region45: #{tpu_custom_call.1} parent=27 // pred_check
          %p2362 = pneg %p125
        $region46: #{tpu_custom_call.1} parent=27 // pred_check_branch
          %2364 = sbr.rel (%p2362) target = $region48
        $region47: #{tpu_custom_call.1} parent=27 // pred_region
          %s2366 = ssub.s32 16, 16
          %2367 = vsyncadd [#allocation5], %s2366
          %s2369 = sshll.u32 [#allocation4], 4
          %s2370 = int_to_ptr.vmem [resolvable:$true] %s2369
          %2372 = dma.vmem_to_hbm [thread:$0]  %s2370, 16, %s4, [#allocation5]
        $region48: #{tpu_custom_call.1} parent=27 // pred_fallthru
          _
        // Predicated region
        $region49: #{tpu_custom_call.1} parent=27 // pred_check
          %p2373 = pneg %p104
        $region50: #{tpu_custom_call.1} parent=27 // pred_check_branch
          %2375 = sbr.rel (%p2373) target = $region52
        $region51: #{tpu_custom_call.1} parent=27 // pred_region
          %2376 = dma.done [#allocation3], 16
        $region52: #{tpu_custom_call.1} parent=27 // pred_fallthru
          _
        // Predicated region
        $region53: #{tpu_custom_call.1} parent=27 // pred_check
          %p2377 = pneg %p125
        $region54: #{tpu_custom_call.1} parent=27 // pred_check_branch
          %2379 = sbr.rel (%p2377) target = $region56
        $region55: #{tpu_custom_call.1} parent=27 // pred_region
          %2380 = dma.done [#allocation5], 16
        $region56: #{tpu_custom_call.1} parent=27 // pred_fallthru
          _
      $region28: #{tpu_custom_call.1} parent=5 // pred_fallthru
        _
      %p2381 = scmp.le.s32.totalorder 2, %s13
      // Predicated region
      $region57: #{tpu_custom_call.1} parent=5 // pred_check
        %p2382 = pneg %p2381
      $region58: #{tpu_custom_call.1} parent=5 // pred_check_branch
        %2384 = sbr.rel (%p2382) target = $region60
      $region59: #{tpu_custom_call.1} parent=5 // pred_region
        %s2385 = ssub.s32 %s13, 2
        // Predicated region
        $region61: #{tpu_custom_call.1} parent=59 // pred_check
          %p2386 = pneg %p89
        $region62: #{tpu_custom_call.1} parent=59 // pred_check_branch
          %2388 = sbr.rel (%p2386) target = $region64
        $region63: #{tpu_custom_call.1} parent=59 // pred_region
          %s2389 = smul.u32 32, %s19
          %p2390 = scmp.lt.s32.totalorder %s2389, 63
          %s2391 = scalar_select %p2390, %s2389, 63
          %s2392 = smul.addr %s2391, 8
          %s2393 = scalar_lea.vmem %s2, %s2392
        $region64: #{tpu_custom_call.1} parent=59 // pred_fallthru
          _
      $region60: #{tpu_custom_call.1} parent=5 // pred_fallthru
        _
    $region6: #{tpu_custom_call.1} parent=1 // loop_footer
      %s17 = sadd.s32 1, %s13
    $region7: #{tpu_custom_call.1} parent=1 // loop_footer_branch
      %12 = sbr.rel target = $region3
    $region8: #{tpu_custom_call.1} parent=1 // loop_exit
      _
    %2394 = vsyncpa [#allocation3], 1
    %s2395 = scalar_lea.sflag [#allocation3], 1
    %2396 = vsyncpa %s2395, 1
    %2397 = vsyncpa [#allocation5], 1

</llo_original>
